<compile_context>
chip_gen: v7x
topology: tpu7x:2x2x1
jax: 0.10.0
libtpu: 0.0.40
codegen_flags: <defaults>
</compile_context>

<pallas_src>
import jax
import jax.numpy as jnp
from jax import lax
from jax.experimental import pallas as pl
from jax.experimental.pallas import tpu as pltpu


def _dot(a, b):
    # bf16 operands, f32 accumulation (native single-pass MXU on v5e/v6e/v7x).
    return jnp.dot(a.astype(jnp.bfloat16), b.astype(jnp.bfloat16),
                   preferred_element_type=jnp.float32)


# -----------------------------------------------------------------------------
# Fused LeNet kernel: one grid step == TB images, everything stays in VMEM.
# -----------------------------------------------------------------------------
def _lenet_kernel(x_ref, m1_ref, b1_ref, q1_ref, p1_ref,
                  m2_ref, b2_ref, q2_ref, p2_ref,
                  wfc1_ref, bfc1_ref, wfc2_ref, bfc2_ref, wfc3_ref, bfc3_ref,
                  o_ref):
    TB = x_ref.shape[0]
    x = x_ref[...]                                            # (TB, 32, 32) f32

    # ---- conv1 (1->6, 5x5, valid) as ONE batched banded matmul --------------
    # lhs1[b*28 + i, di*32 + p] = x[b, i + di, p]
    lhs1 = jnp.concatenate(
        [jnp.concatenate([x[b, di:di + 28, :] for di in range(5)], axis=1)
         for b in range(TB)], axis=0)                         # (TB*28, 160)
    a1 = jnp.maximum(_dot(lhs1, m1_ref[...]) + b1_ref[...], 0.0)   # (TB*28, 168)

    # ---- avgpool1: column pairs (per-channel) then per-image row pairs ------
    pooled1 = _dot(p1_ref[...], _dot(a1, q1_ref[...]))        # (TB*14, 84)

    # ---- conv2 (6->16, 5x5, valid) as ONE batched banded matmul -------------
    # lhs2[b*10 + i, di*84 + c*14 + p] = pooled1[b*14 + di + i, c*14 + p]
    lhs2 = jnp.concatenate(
        [jnp.concatenate([pooled1[b * 14 + di:b * 14 + di + 10, :]
                          for di in range(5)], axis=1)
         for b in range(TB)], axis=0)                         # (TB*10, 420)
    a2 = jnp.maximum(_dot(lhs2, m2_ref[...]) + b2_ref[...], 0.0)   # (TB*10, 160)

    # ---- avgpool2 ------------------------------------------------------------
    pooled2 = _dot(p2_ref[...], _dot(a2, q2_ref[...]))        # (TB*5, 80)

    # ---- flatten (NCHW order folded into reordered fc1 rows) -----------------
    # feats[b, i*80 + c*5 + j] = pool2[b, c, i, j]
    feats = jnp.concatenate(
        [jnp.concatenate([pooled2[b * 5 + i:b * 5 + i + 1, :]
                          for i in range(5)], axis=1)
         for b in range(TB)], axis=0)                         # (TB, 400)

    # ---- classifier: real (TB, K) @ (K, N) matmuls ---------------------------
    z1 = jnp.maximum(_dot(feats, wfc1_ref[...]) + bfc1_ref[...], 0.0)  # (TB,120)
    z2 = jnp.maximum(_dot(z1, wfc2_ref[...]) + bfc2_ref[...], 0.0)     # (TB, 84)
    logits = _dot(z2, wfc3_ref[...]) + bfc3_ref[...]                   # (TB,128)

    # softmax in f32 over the lane-dense 128-wide slab (padded lanes carry
    # bias = -1e30 so they contribute exactly 0 to the denominator).
    logits = logits - jnp.max(logits, axis=-1, keepdims=True)
    e = jnp.exp(logits)
    o_ref[...] = e / jnp.sum(e, axis=-1, keepdims=True)       # (TB, 128)


# -----------------------------------------------------------------------------
# Host-side, one-time weight preparation (pure XLA on ~250 KiB of params).
# -----------------------------------------------------------------------------
def _band_weight_matrices(w, w_in, w_out):
    """w: (O, C, K, K) -> (C, K, w_in, O*w_out) banded (Toeplitz) matrices.

    M[c, di][p, o*w_out + j] = w[o, c, di, p - j] if 0 <= p - j < K else 0,
    so that sum_{c,di} x[c, di:di+h_out, :w_in] @ M[c, di] is the valid 2-D
    cross-correlation with output columns ordered (o, j).
    """
    O, C, K, _ = w.shape
    j = jnp.arange(w_out)
    p = jnp.arange(w_in)
    dj = p[:, None] - j[None, :]                              # (w_in, w_out)
    valid = (dj >= 0) & (dj < K)
    g = w[:, :, :, jnp.clip(dj, 0, K - 1)]                    # (O, C, K, w_in, w_out)
    g = jnp.where(valid[None, None, None], g, 0.0)
    g = g.transpose(1, 2, 3, 0, 4)                            # (C, K, w_in, O, w_out)
    return g.reshape(C, K, w_in, O * w_out)


def _pool_left(n):
    """(n//2, n) row-pair averaging matrix."""
    sel = (jnp.arange(n)[None, :] // 2 == jnp.arange(n // 2)[:, None])
    return 0.5 * sel.astype(jnp.float32)


def _pool_right(n, channels):
    """(channels*n, channels*(n//2)) column-pair averaging, block-diag over channels."""
    return jnp.kron(jnp.eye(channels, dtype=jnp.float32), _pool_left(n).T)


def prepare_lenet_params(params):
    f32, bf16 = jnp.float32, jnp.bfloat16
    w1 = params["conv1_w"].astype(f32)                        # (6, 1, 5, 5)
    w2 = params["conv2_w"].astype(f32)                        # (16, 6, 5, 5)

    # conv1: row order (di, p)  -> (160, 168)
    m1 = _band_weight_matrices(w1, 32, 28).reshape(5 * 32, 6 * 28)
    # conv2: row order (di, c, p) -> (420, 160), matching the in-kernel LHS
    m2 = (_band_weight_matrices(w2, 14, 10)                   # (6, 5, 14, 160)
          .transpose(1, 0, 2, 3).reshape(5 * 6 * 14, 16 * 10))

    b1 = jnp.repeat(params["conv1_b"].astype(f32), 28)[None, :]   # (1, 168)
    b2 = jnp.repeat(params["conv2_b"].astype(f32), 10)[None, :]   # (1, 160)

    q1 = _pool_right(28, 6)                                   # (168, 84)
    q2 = _pool_right(10, 16)                                  # (160, 80)

    # Reorder fc1 rows: row (i*80 + c*5 + j) multiplies feats[b, i*80 + c*5 + j]
    # = pool2[c, i, j], i.e. NCHW-flatten index c*25 + i*5 + j.
    wfc1 = (params["fc1_w"].astype(f32)
            .reshape(16, 5, 5, 120).transpose(1, 0, 2, 3).reshape(400, 120))
    bfc1 = params["fc1_b"].astype(f32)[None, :]
    wfc2 = params["fc2_w"].astype(f32)
    bfc2 = params["fc2_b"].astype(f32)[None, :]
    # Lane-dense fc3: pad to 128 output lanes; padded bias = -1e30 so that the
    # 128-lane softmax equals the 10-class softmax (padded probs underflow to 0).
    wfc3 = jnp.zeros((84, 128), f32).at[:, :10].set(params["fc3_w"].astype(f32))
    bfc3 = jnp.full((1, 128), -1e30, f32).at[:, :10].set(params["fc3_b"].astype(f32))

    return {
        "m1": m1.astype(bf16), "b1": b1, "q1": q1.astype(bf16),
        "m2": m2.astype(bf16), "b2": b2, "q2": q2.astype(bf16),
        "wfc1": wfc1.astype(bf16), "bfc1": bfc1,
        "wfc2": wfc2.astype(bf16), "bfc2": bfc2,
        "wfc3": wfc3.astype(bf16), "bfc3": bfc3,
    }


# -----------------------------------------------------------------------------
# Forward pass: a single pallas_call, grid over batch tiles of TB images.
# -----------------------------------------------------------------------------
def _const_index_map(ndim):
    return lambda g: (0,) * ndim


def lenet_forward(prepared, x, max_tb=8):
    """x: (B, 1, 32, 32) NCHW -> (B, 10) softmax probabilities."""
    B = x.shape[0]
    assert x.shape[1:] == (1, 32, 32)
    TB = B if B <= max_tb else max_tb
    B_pad = ((B + TB - 1) // TB) * TB

    x3 = x.astype(jnp.float32).reshape(B, 32, 32)
    if B_pad != B:
        x3 = jnp.pad(x3, ((0, B_pad - B), (0, 0), (0, 0)))

    # Per-tile block-diagonal row-pooling matrices (pure constants, bf16).
    bf16 = jnp.bfloat16
    eye_tb = jnp.eye(TB, dtype=jnp.float32)
    p1 = jnp.kron(eye_tb, _pool_left(28)).astype(bf16)        # (TB*14, TB*28)
    p2 = jnp.kron(eye_tb, _pool_left(10)).astype(bf16)        # (TB*5,  TB*10)

    weights = (prepared["m1"], prepared["b1"], prepared["q1"], p1,
               prepared["m2"], prepared["b2"], prepared["q2"], p2,
               prepared["wfc1"], prepared["bfc1"],
               prepared["wfc2"], prepared["bfc2"],
               prepared["wfc3"], prepared["bfc3"])

    in_specs = [pl.BlockSpec((TB, 32, 32), lambda g: (g, 0, 0))]
    in_specs += [pl.BlockSpec(w.shape, _const_index_map(w.ndim)) for w in weights]

    out = pl.pallas_call(
        _lenet_kernel,
        grid=(B_pad // TB,),
        in_specs=in_specs,
        out_specs=pl.BlockSpec((TB, 128), lambda g: (g, 0)),
        out_shape=jax.ShapeDtypeStruct((B_pad, 128), jnp.float32),
        compiler_params=pltpu.CompilerParams(
            dimension_semantics=("parallel",)),
    )(x3, *weights)
    return out[:B, :10]


# -----------------------------------------------------------------------------
# Synthetic params + pure-JAX reference (same math as the PyTorch module).
# -----------------------------------------------------------------------------
def init_lenet_params(key):
    ks = jax.random.split(key, 10)
    p = {}
    p["conv1_w"] = 0.1 * jax.random.normal(ks[0], (6, 1, 5, 5), jnp.float32)
    p["conv1_b"] = 0.01 * jax.random.normal(ks[1], (6,), jnp.float32)
    p["conv2_w"] = 0.1 * jax.random.normal(ks[2], (16, 6, 5, 5), jnp.float32)
    p["conv2_b"] = 0.01 * jax.random.normal(ks[3], (16,), jnp.float32)
    p["fc1_w"] = 0.1 * jax.random.normal(ks[4], (400, 120), jnp.float32)
    p["fc1_b"] = 0.01 * jax.random.normal(ks[5], (120,), jnp.float32)
    p["fc2_w"] = 0.1 * jax.random.normal(ks[6], (120, 84), jnp.float32)
    p["fc2_b"] = 0.01 * jax.random.normal(ks[7], (84,), jnp.float32)
    p["fc3_w"] = 0.1 * jax.random.normal(ks[8], (84, 10), jnp.float32)
    p["fc3_b"] = 0.01 * jax.random.normal(ks[9], (10,), jnp.float32)
    return p


def lenet_reference(params, x):
    hp = lax.Precision.HIGHEST
    dn = ("NCHW", "OIHW", "NCHW")

    def conv(a, w, b):
        y = lax.conv_general_dilated(a, w, (1, 1), "VALID",
                                     dimension_numbers=dn, precision=hp)
        return jnp.maximum(y + b[None, :, None, None], 0.0)

    def pool(a):
        B, C, H, W = a.shape
        return a.reshape(B, C, H // 2, 2, W // 2, 2).mean(axis=(3, 5))

    a = pool(conv(x, params["conv1_w"], params["conv1_b"]))
    a = pool(conv(a, params["conv2_w"], params["conv2_b"]))
    a = a.reshape(a.shape[0], -1)
    a = jnp.maximum(jnp.dot(a, params["fc1_w"], precision=hp) + params["fc1_b"], 0.0)
    a = jnp.maximum(jnp.dot(a, params["fc2_w"], precision=hp) + params["fc2_b"], 0.0)
    a = jnp.dot(a, params["fc3_w"], precision=hp) + params["fc3_b"]
    return jax.nn.softmax(a, axis=-1)


if __name__ == "__main__":
    key = jax.random.PRNGKey(0)
    k_x, k_p = jax.random.split(key)
    # Classic LeNet-5 input: 1 channel, 32x32 (required for the 400-dim flatten).
    x = jax.random.normal(k_x, (2, 1, 32, 32), dtype=jnp.float32)
    params = init_lenet_params(k_p)

    prepared = prepare_lenet_params(params)
    out = jax.jit(lenet_forward)(prepared, x)
    out = jax.block_until_ready(out)

    assert out.shape == (2, 10)
    assert bool(jnp.allclose(jnp.sum(out, axis=1), 1.0, atol=1e-5))
    ref = lenet_reference(params, x)
    assert bool(jnp.allclose(out, ref, atol=2e-2)), "Pallas LeNet disagrees with reference"
    print("KERNEL_OK")
</pallas_src>

<mosaic_0001>
module attributes {stable_mosaic.version = 11 : i64} {
  func.func @_lenet_kernel(%arg0: i32, %arg1: memref<2x32x32xf32, #tpu.memory_space<vmem>>, %arg2: memref<160x168xbf16, #tpu.memory_space<vmem>>, %arg3: memref<1x168xf32, #tpu.memory_space<vmem>>, %arg4: memref<168x84xbf16, #tpu.memory_space<vmem>>, %arg5: memref<28x56xbf16, #tpu.memory_space<vmem>>, %arg6: memref<420x160xbf16, #tpu.memory_space<vmem>>, %arg7: memref<1x160xf32, #tpu.memory_space<vmem>>, %arg8: memref<160x80xbf16, #tpu.memory_space<vmem>>, %arg9: memref<10x20xbf16, #tpu.memory_space<vmem>>, %arg10: memref<400x120xbf16, #tpu.memory_space<vmem>>, %arg11: memref<1x120xf32, #tpu.memory_space<vmem>>, %arg12: memref<120x84xbf16, #tpu.memory_space<vmem>>, %arg13: memref<1x84xf32, #tpu.memory_space<vmem>>, %arg14: memref<84x128xbf16, #tpu.memory_space<vmem>>, %arg15: memref<1x128xf32, #tpu.memory_space<vmem>>, %arg16: memref<2x128xf32, #tpu.memory_space<vmem>>) attributes {dimension_semantics = [#tpu.dimension_semantics<parallel>], iteration_bounds = array<i64: 1>, scalar_prefetch = 0 : i64, scratch_operands = 0 : i64, tpu.core_type = #tpu.core_type<tc>, window_params = [{transform_indices = @transform_0, window_bounds = array<i64: 2, 32, 32>}, {pipeline_mode = #tpu.pipeline_mode<synchronous>, transform_indices = @transform_1, window_bounds = array<i64: 160, 168>}, {pipeline_mode = #tpu.pipeline_mode<synchronous>, transform_indices = @transform_2, window_bounds = array<i64: 1, 168>}, {pipeline_mode = #tpu.pipeline_mode<synchronous>, transform_indices = @transform_3, window_bounds = array<i64: 168, 84>}, {pipeline_mode = #tpu.pipeline_mode<synchronous>, transform_indices = @transform_4, window_bounds = array<i64: 28, 56>}, {pipeline_mode = #tpu.pipeline_mode<synchronous>, transform_indices = @transform_5, window_bounds = array<i64: 420, 160>}, {pipeline_mode = #tpu.pipeline_mode<synchronous>, transform_indices = @transform_6, window_bounds = array<i64: 1, 160>}, {pipeline_mode = #tpu.pipeline_mode<synchronous>, transform_indices = @transform_7, window_bounds = array<i64: 160, 80>}, {pipeline_mode = #tpu.pipeline_mode<synchronous>, transform_indices = @transform_8, window_bounds = array<i64: 10, 20>}, {pipeline_mode = #tpu.pipeline_mode<synchronous>, transform_indices = @transform_9, window_bounds = array<i64: 400, 120>}, {pipeline_mode = #tpu.pipeline_mode<synchronous>, transform_indices = @transform_10, window_bounds = array<i64: 1, 120>}, {pipeline_mode = #tpu.pipeline_mode<synchronous>, transform_indices = @transform_11, window_bounds = array<i64: 120, 84>}, {pipeline_mode = #tpu.pipeline_mode<synchronous>, transform_indices = @transform_12, window_bounds = array<i64: 1, 84>}, {pipeline_mode = #tpu.pipeline_mode<synchronous>, transform_indices = @transform_13, window_bounds = array<i64: 84, 128>}, {pipeline_mode = #tpu.pipeline_mode<synchronous>, transform_indices = @transform_14, window_bounds = array<i64: 1, 128>}, {transform_indices = @transform_15, window_bounds = array<i64: 2, 128>}]} {
    %c0 = arith.constant 0 : index
    %c0_0 = arith.constant 0 : index
    %c0_1 = arith.constant 0 : index
    %0 = vector.load %arg1[%c0, %c0_0, %c0_1] : memref<2x32x32xf32, #tpu.memory_space<vmem>>, vector<2x32x32xf32>
    %1 = vector.extract_strided_slice %0 {offsets = [0, 0, 0], sizes = [1, 28, 32], strides = [1, 1, 1]} : vector<2x32x32xf32> to vector<1x28x32xf32>
    %2 = vector.shape_cast %1 : vector<1x28x32xf32> to vector<28x32xf32>
    %3 = vector.extract_strided_slice %0 {offsets = [0, 1, 0], sizes = [1, 28, 32], strides = [1, 1, 1]} : vector<2x32x32xf32> to vector<1x28x32xf32>
    %4 = vector.shape_cast %3 : vector<1x28x32xf32> to vector<28x32xf32>
    %5 = vector.extract_strided_slice %0 {offsets = [0, 2, 0], sizes = [1, 28, 32], strides = [1, 1, 1]} : vector<2x32x32xf32> to vector<1x28x32xf32>
    %6 = vector.shape_cast %5 : vector<1x28x32xf32> to vector<28x32xf32>
    %7 = vector.extract_strided_slice %0 {offsets = [0, 3, 0], sizes = [1, 28, 32], strides = [1, 1, 1]} : vector<2x32x32xf32> to vector<1x28x32xf32>
    %8 = vector.shape_cast %7 : vector<1x28x32xf32> to vector<28x32xf32>
    %9 = vector.extract_strided_slice %0 {offsets = [0, 4, 0], sizes = [1, 28, 32], strides = [1, 1, 1]} : vector<2x32x32xf32> to vector<1x28x32xf32>
    %10 = vector.shape_cast %9 : vector<1x28x32xf32> to vector<28x32xf32>
    %11 = tpu.concatenate %2, %4, %6, %8, %10 in 1 : vector<28x32xf32>, vector<28x32xf32>, vector<28x32xf32>, vector<28x32xf32>, vector<28x32xf32> -> vector<28x160xf32>
    %12 = vector.extract_strided_slice %0 {offsets = [1, 0, 0], sizes = [1, 28, 32], strides = [1, 1, 1]} : vector<2x32x32xf32> to vector<1x28x32xf32>
    %13 = vector.shape_cast %12 : vector<1x28x32xf32> to vector<28x32xf32>
    %14 = vector.extract_strided_slice %0 {offsets = [1, 1, 0], sizes = [1, 28, 32], strides = [1, 1, 1]} : vector<2x32x32xf32> to vector<1x28x32xf32>
    %15 = vector.shape_cast %14 : vector<1x28x32xf32> to vector<28x32xf32>
    %16 = vector.extract_strided_slice %0 {offsets = [1, 2, 0], sizes = [1, 28, 32], strides = [1, 1, 1]} : vector<2x32x32xf32> to vector<1x28x32xf32>
    %17 = vector.shape_cast %16 : vector<1x28x32xf32> to vector<28x32xf32>
    %18 = vector.extract_strided_slice %0 {offsets = [1, 3, 0], sizes = [1, 28, 32], strides = [1, 1, 1]} : vector<2x32x32xf32> to vector<1x28x32xf32>
    %19 = vector.shape_cast %18 : vector<1x28x32xf32> to vector<28x32xf32>
    %20 = vector.extract_strided_slice %0 {offsets = [1, 4, 0], sizes = [1, 28, 32], strides = [1, 1, 1]} : vector<2x32x32xf32> to vector<1x28x32xf32>
    %21 = vector.shape_cast %20 : vector<1x28x32xf32> to vector<28x32xf32>
    %22 = tpu.concatenate %13, %15, %17, %19, %21 in 1 : vector<28x32xf32>, vector<28x32xf32>, vector<28x32xf32>, vector<28x32xf32>, vector<28x32xf32> -> vector<28x160xf32>
    %23 = tpu.concatenate %11, %22 in 0 : vector<28x160xf32>, vector<28x160xf32> -> vector<56x160xf32>
    %c0_2 = arith.constant 0 : index
    %c0_3 = arith.constant 0 : index
    %24 = vector.load %arg2[%c0_2, %c0_3] : memref<160x168xbf16, #tpu.memory_space<vmem>>, vector<160x168xbf16>
    %25 = arith.truncf %23 : vector<56x160xf32> to vector<56x160xbf16>
    %cst = arith.constant dense<0.000000e+00> : vector<56x168xf32>
    %26 = tpu.matmul %25, %24, %cst {dimension_numbers = #tpu.dot_dimension_numbers<[1], [0], [0], [1], [0, 0, 1, 1], [], []>} : vector<56x160xbf16>, vector<160x168xbf16>, vector<56x168xf32> -> vector<56x168xf32>
    %c0_4 = arith.constant 0 : index
    %c0_5 = arith.constant 0 : index
    %27 = vector.load %arg3[%c0_4, %c0_5] : memref<1x168xf32, #tpu.memory_space<vmem>>, vector<1x168xf32>
    %28 = vector.broadcast %27 : vector<1x168xf32> to vector<56x168xf32>
    %29 = arith.addf %26, %28 : vector<56x168xf32>
    %cst_6 = arith.constant 0.000000e+00 : f32
    %30 = vector.broadcast %cst_6 : f32 to vector<56x168xf32>
    %31 = arith.maximumf %29, %30 : vector<56x168xf32>
    %c0_7 = arith.constant 0 : index
    %c0_8 = arith.constant 0 : index
    %32 = vector.load %arg5[%c0_7, %c0_8] : memref<28x56xbf16, #tpu.memory_space<vmem>>, vector<28x56xbf16>
    %c0_9 = arith.constant 0 : index
    %c0_10 = arith.constant 0 : index
    %33 = vector.load %arg4[%c0_9, %c0_10] : memref<168x84xbf16, #tpu.memory_space<vmem>>, vector<168x84xbf16>
    %34 = arith.truncf %31 : vector<56x168xf32> to vector<56x168xbf16>
    %cst_11 = arith.constant dense<0.000000e+00> : vector<56x84xf32>
    %35 = tpu.matmul %34, %33, %cst_11 {dimension_numbers = #tpu.dot_dimension_numbers<[1], [0], [0], [1], [0, 0, 1, 1], [], []>} : vector<56x168xbf16>, vector<168x84xbf16>, vector<56x84xf32> -> vector<56x84xf32>
    %36 = arith.truncf %35 : vector<56x84xf32> to vector<56x84xbf16>
    %cst_12 = arith.constant dense<0.000000e+00> : vector<28x84xf32>
    %37 = tpu.matmul %32, %36, %cst_12 {dimension_numbers = #tpu.dot_dimension_numbers<[1], [0], [0], [1], [0, 0, 1, 1], [], []>} : vector<28x56xbf16>, vector<56x84xbf16>, vector<28x84xf32> -> vector<28x84xf32>
    %38 = vector.extract_strided_slice %37 {offsets = [0, 0], sizes = [10, 84], strides = [1, 1]} : vector<28x84xf32> to vector<10x84xf32>
    %39 = vector.extract_strided_slice %37 {offsets = [1, 0], sizes = [10, 84], strides = [1, 1]} : vector<28x84xf32> to vector<10x84xf32>
    %40 = vector.extract_strided_slice %37 {offsets = [2, 0], sizes = [10, 84], strides = [1, 1]} : vector<28x84xf32> to vector<10x84xf32>
    %41 = vector.extract_strided_slice %37 {offsets = [3, 0], sizes = [10, 84], strides = [1, 1]} : vector<28x84xf32> to vector<10x84xf32>
    %42 = vector.extract_strided_slice %37 {offsets = [4, 0], sizes = [10, 84], strides = [1, 1]} : vector<28x84xf32> to vector<10x84xf32>
    %43 = tpu.concatenate %38, %39, %40, %41, %42 in 1 : vector<10x84xf32>, vector<10x84xf32>, vector<10x84xf32>, vector<10x84xf32>, vector<10x84xf32> -> vector<10x420xf32>
    %44 = vector.extract_strided_slice %37 {offsets = [14, 0], sizes = [10, 84], strides = [1, 1]} : vector<28x84xf32> to vector<10x84xf32>
    %45 = vector.extract_strided_slice %37 {offsets = [15, 0], sizes = [10, 84], strides = [1, 1]} : vector<28x84xf32> to vector<10x84xf32>
    %46 = vector.extract_strided_slice %37 {offsets = [16, 0], sizes = [10, 84], strides = [1, 1]} : vector<28x84xf32> to vector<10x84xf32>
    %47 = vector.extract_strided_slice %37 {offsets = [17, 0], sizes = [10, 84], strides = [1, 1]} : vector<28x84xf32> to vector<10x84xf32>
    %48 = vector.extract_strided_slice %37 {offsets = [18, 0], sizes = [10, 84], strides = [1, 1]} : vector<28x84xf32> to vector<10x84xf32>
    %49 = tpu.concatenate %44, %45, %46, %47, %48 in 1 : vector<10x84xf32>, vector<10x84xf32>, vector<10x84xf32>, vector<10x84xf32>, vector<10x84xf32> -> vector<10x420xf32>
    %50 = tpu.concatenate %43, %49 in 0 : vector<10x420xf32>, vector<10x420xf32> -> vector<20x420xf32>
    %c0_13 = arith.constant 0 : index
    %c0_14 = arith.constant 0 : index
    %51 = vector.load %arg6[%c0_13, %c0_14] : memref<420x160xbf16, #tpu.memory_space<vmem>>, vector<420x160xbf16>
    %52 = arith.truncf %50 : vector<20x420xf32> to vector<20x420xbf16>
    %cst_15 = arith.constant dense<0.000000e+00> : vector<20x160xf32>
    %53 = tpu.matmul %52, %51, %cst_15 {dimension_numbers = #tpu.dot_dimension_numbers<[1], [0], [0], [1], [0, 0, 1, 1], [], []>} : vector<20x420xbf16>, vector<420x160xbf16>, vector<20x160xf32> -> vector<20x160xf32>
    %c0_16 = arith.constant 0 : index
    %c0_17 = arith.constant 0 : index
    %54 = vector.load %arg7[%c0_16, %c0_17] : memref<1x160xf32, #tpu.memory_space<vmem>>, vector<1x160xf32>
    %55 = vector.broadcast %54 : vector<1x160xf32> to vector<20x160xf32>
    %56 = arith.addf %53, %55 : vector<20x160xf32>
    %cst_18 = arith.constant 0.000000e+00 : f32
    %57 = vector.broadcast %cst_18 : f32 to vector<20x160xf32>
    %58 = arith.maximumf %56, %57 : vector<20x160xf32>
    %c0_19 = arith.constant 0 : index
    %c0_20 = arith.constant 0 : index
    %59 = vector.load %arg9[%c0_19, %c0_20] : memref<10x20xbf16, #tpu.memory_space<vmem>>, vector<10x20xbf16>
    %c0_21 = arith.constant 0 : index
    %c0_22 = arith.constant 0 : index
    %60 = vector.load %arg8[%c0_21, %c0_22] : memref<160x80xbf16, #tpu.memory_space<vmem>>, vector<160x80xbf16>
    %61 = arith.truncf %58 : vector<20x160xf32> to vector<20x160xbf16>
    %cst_23 = arith.constant dense<0.000000e+00> : vector<20x80xf32>
    %62 = tpu.matmul %61, %60, %cst_23 {dimension_numbers = #tpu.dot_dimension_numbers<[1], [0], [0], [1], [0, 0, 1, 1], [], []>} : vector<20x160xbf16>, vector<160x80xbf16>, vector<20x80xf32> -> vector<20x80xf32>
    %63 = arith.truncf %62 : vector<20x80xf32> to vector<20x80xbf16>
    %cst_24 = arith.constant dense<0.000000e+00> : vector<10x80xf32>
    %64 = tpu.matmul %59, %63, %cst_24 {dimension_numbers = #tpu.dot_dimension_numbers<[1], [0], [0], [1], [0, 0, 1, 1], [], []>} : vector<10x20xbf16>, vector<20x80xbf16>, vector<10x80xf32> -> vector<10x80xf32>
    %65 = vector.extract_strided_slice %64 {offsets = [0, 0], sizes = [1, 80], strides = [1, 1]} : vector<10x80xf32> to vector<1x80xf32>
    %66 = vector.extract_strided_slice %64 {offsets = [1, 0], sizes = [1, 80], strides = [1, 1]} : vector<10x80xf32> to vector<1x80xf32>
    %67 = vector.extract_strided_slice %64 {offsets = [2, 0], sizes = [1, 80], strides = [1, 1]} : vector<10x80xf32> to vector<1x80xf32>
    %68 = vector.extract_strided_slice %64 {offsets = [3, 0], sizes = [1, 80], strides = [1, 1]} : vector<10x80xf32> to vector<1x80xf32>
    %69 = vector.extract_strided_slice %64 {offsets = [4, 0], sizes = [1, 80], strides = [1, 1]} : vector<10x80xf32> to vector<1x80xf32>
    %70 = tpu.concatenate %65, %66, %67, %68, %69 in 1 : vector<1x80xf32>, vector<1x80xf32>, vector<1x80xf32>, vector<1x80xf32>, vector<1x80xf32> -> vector<1x400xf32>
    %71 = vector.extract_strided_slice %64 {offsets = [5, 0], sizes = [1, 80], strides = [1, 1]} : vector<10x80xf32> to vector<1x80xf32>
    %72 = vector.extract_strided_slice %64 {offsets = [6, 0], sizes = [1, 80], strides = [1, 1]} : vector<10x80xf32> to vector<1x80xf32>
    %73 = vector.extract_strided_slice %64 {offsets = [7, 0], sizes = [1, 80], strides = [1, 1]} : vector<10x80xf32> to vector<1x80xf32>
    %74 = vector.extract_strided_slice %64 {offsets = [8, 0], sizes = [1, 80], strides = [1, 1]} : vector<10x80xf32> to vector<1x80xf32>
    %75 = vector.extract_strided_slice %64 {offsets = [9, 0], sizes = [1, 80], strides = [1, 1]} : vector<10x80xf32> to vector<1x80xf32>
    %76 = tpu.concatenate %71, %72, %73, %74, %75 in 1 : vector<1x80xf32>, vector<1x80xf32>, vector<1x80xf32>, vector<1x80xf32>, vector<1x80xf32> -> vector<1x400xf32>
    %77 = tpu.concatenate %70, %76 in 0 : vector<1x400xf32>, vector<1x400xf32> -> vector<2x400xf32>
    %c0_25 = arith.constant 0 : index
    %c0_26 = arith.constant 0 : index
    %78 = vector.load %arg10[%c0_25, %c0_26] : memref<400x120xbf16, #tpu.memory_space<vmem>>, vector<400x120xbf16>
    %79 = arith.truncf %77 : vector<2x400xf32> to vector<2x400xbf16>
    %cst_27 = arith.constant dense<0.000000e+00> : vector<2x120xf32>
    %80 = tpu.matmul %79, %78, %cst_27 {dimension_numbers = #tpu.dot_dimension_numbers<[1], [0], [0], [1], [0, 0, 1, 1], [], []>} : vector<2x400xbf16>, vector<400x120xbf16>, vector<2x120xf32> -> vector<2x120xf32>
    %c0_28 = arith.constant 0 : index
    %c0_29 = arith.constant 0 : index
    %81 = vector.load %arg11[%c0_28, %c0_29] : memref<1x120xf32, #tpu.memory_space<vmem>>, vector<1x120xf32>
    %82 = vector.broadcast %81 : vector<1x120xf32> to vector<2x120xf32>
    %83 = arith.addf %80, %82 : vector<2x120xf32>
    %cst_30 = arith.constant 0.000000e+00 : f32
    %84 = vector.broadcast %cst_30 : f32 to vector<2x120xf32>
    %85 = arith.maximumf %83, %84 : vector<2x120xf32>
    %c0_31 = arith.constant 0 : index
    %c0_32 = arith.constant 0 : index
    %86 = vector.load %arg12[%c0_31, %c0_32] : memref<120x84xbf16, #tpu.memory_space<vmem>>, vector<120x84xbf16>
    %87 = arith.truncf %85 : vector<2x120xf32> to vector<2x120xbf16>
    %cst_33 = arith.constant dense<0.000000e+00> : vector<2x84xf32>
    %88 = tpu.matmul %87, %86, %cst_33 {dimension_numbers = #tpu.dot_dimension_numbers<[1], [0], [0], [1], [0, 0, 1, 1], [], []>} : vector<2x120xbf16>, vector<120x84xbf16>, vector<2x84xf32> -> vector<2x84xf32>
    %c0_34 = arith.constant 0 : index
    %c0_35 = arith.constant 0 : index
    %89 = vector.load %arg13[%c0_34, %c0_35] : memref<1x84xf32, #tpu.memory_space<vmem>>, vector<1x84xf32>
    %90 = vector.broadcast %89 : vector<1x84xf32> to vector<2x84xf32>
    %91 = arith.addf %88, %90 : vector<2x84xf32>
    %cst_36 = arith.constant 0.000000e+00 : f32
    %92 = vector.broadcast %cst_36 : f32 to vector<2x84xf32>
    %93 = arith.maximumf %91, %92 : vector<2x84xf32>
    %c0_37 = arith.constant 0 : index
    %c0_38 = arith.constant 0 : index
    %94 = vector.load %arg14[%c0_37, %c0_38] : memref<84x128xbf16, #tpu.memory_space<vmem>>, vector<84x128xbf16>
    %95 = arith.truncf %93 : vector<2x84xf32> to vector<2x84xbf16>
    %cst_39 = arith.constant dense<0.000000e+00> : vector<2x128xf32>
    %96 = tpu.matmul %95, %94, %cst_39 {dimension_numbers = #tpu.dot_dimension_numbers<[1], [0], [0], [1], [0, 0, 1, 1], [], []>} : vector<2x84xbf16>, vector<84x128xbf16>, vector<2x128xf32> -> vector<2x128xf32>
    %c0_40 = arith.constant 0 : index
    %c0_41 = arith.constant 0 : index
    %97 = vector.load %arg15[%c0_40, %c0_41] : memref<1x128xf32, #tpu.memory_space<vmem>>, vector<1x128xf32>
    %98 = vector.broadcast %97 : vector<1x128xf32> to vector<2x128xf32>
    %99 = arith.addf %96, %98 : vector<2x128xf32>
    %cst_42 = arith.constant dense<0xFF800000> : vector<2xf32>
    %100 = vector.multi_reduction <maximumf>, %99, %cst_42 [1] : vector<2x128xf32> to vector<2xf32>
    %101 = vector.shape_cast %100 : vector<2xf32> to vector<2x1xf32>
    %102 = vector.broadcast %101 : vector<2x1xf32> to vector<2x128xf32>
    %103 = arith.subf %99, %102 : vector<2x128xf32>
    %104 = math.exp %103 : vector<2x128xf32>
    %cst_43 = arith.constant dense<0.000000e+00> : vector<2xf32>
    %105 = vector.multi_reduction <add>, %104, %cst_43 [1] : vector<2x128xf32> to vector<2xf32>
    %106 = vector.shape_cast %105 : vector<2xf32> to vector<2x1xf32>
    %107 = vector.broadcast %106 : vector<2x1xf32> to vector<2x128xf32>
    %108 = arith.divf %104, %107 : vector<2x128xf32>
    %c0_44 = arith.constant 0 : index
    %c0_45 = arith.constant 0 : index
    %109 = vector.load %arg16[%c0_44, %c0_45] : memref<2x128xf32, #tpu.memory_space<vmem>>, vector<2x128xf32>
    tpu.vector_store %arg16[%c0_44, %c0_45], %108 {strides = array<i32>} : memref<2x128xf32, #tpu.memory_space<vmem>>, vector<2x128xf32>,
    return
  }
  func.func @transform_0(%arg0: i32) -> (i32, i32, i32) {
    %c0_i32 = arith.constant 0 : i32
    %c0_i32_0 = arith.constant 0 : i32
    %c0_i32_1 = arith.constant 0 : i32
    return %arg0, %c0_i32, %c0_i32_0 : i32, i32, i32
  }
  func.func @transform_1(%arg0: i32) -> (i32, i32) {
    %c0_i32 = arith.constant 0 : i32
    %c0_i32_0 = arith.constant 0 : i32
    %c0_i32_1 = arith.constant 0 : i32
    return %c0_i32, %c0_i32_0 : i32, i32
  }
  func.func @transform_2(%arg0: i32) -> (i32, i32) {
    %c0_i32 = arith.constant 0 : i32
    %c0_i32_0 = arith.constant 0 : i32
    %c0_i32_1 = arith.constant 0 : i32
    return %c0_i32, %c0_i32_0 : i32, i32
  }
  func.func @transform_3(%arg0: i32) -> (i32, i32) {
    %c0_i32 = arith.constant 0 : i32
    %c0_i32_0 = arith.constant 0 : i32
    %c0_i32_1 = arith.constant 0 : i32
    return %c0_i32, %c0_i32_0 : i32, i32
  }
  func.func @transform_4(%arg0: i32) -> (i32, i32) {
    %c0_i32 = arith.constant 0 : i32
    %c0_i32_0 = arith.constant 0 : i32
    %c0_i32_1 = arith.constant 0 : i32
    return %c0_i32, %c0_i32_0 : i32, i32
  }
  func.func @transform_5(%arg0: i32) -> (i32, i32) {
    %c0_i32 = arith.constant 0 : i32
    %c0_i32_0 = arith.constant 0 : i32
    %c0_i32_1 = arith.constant 0 : i32
    return %c0_i32, %c0_i32_0 : i32, i32
  }
  func.func @transform_6(%arg0: i32) -> (i32, i32) {
    %c0_i32 = arith.constant 0 : i32
    %c0_i32_0 = arith.constant 0 : i32
    %c0_i32_1 = arith.constant 0 : i32
    return %c0_i32, %c0_i32_0 : i32, i32
  }
  func.func @transform_7(%arg0: i32) -> (i32, i32) {
    %c0_i32 = arith.constant 0 : i32
    %c0_i32_0 = arith.constant 0 : i32
    %c0_i32_1 = arith.constant 0 : i32
    return %c0_i32, %c0_i32_0 : i32, i32
  }
  func.func @transform_8(%arg0: i32) -> (i32, i32) {
    %c0_i32 = arith.constant 0 : i32
    %c0_i32_0 = arith.constant 0 : i32
    %c0_i32_1 = arith.constant 0 : i32
    return %c0_i32, %c0_i32_0 : i32, i32
  }
  func.func @transform_9(%arg0: i32) -> (i32, i32) {
    %c0_i32 = arith.constant 0 : i32
    %c0_i32_0 = arith.constant 0 : i32
    %c0_i32_1 = arith.constant 0 : i32
    return %c0_i32, %c0_i32_0 : i32, i32
  }
  func.func @transform_10(%arg0: i32) -> (i32, i32) {
    %c0_i32 = arith.constant 0 : i32
    %c0_i32_0 = arith.constant 0 : i32
    %c0_i32_1 = arith.constant 0 : i32
    return %c0_i32, %c0_i32_0 : i32, i32
  }
  func.func @transform_11(%arg0: i32) -> (i32, i32) {
    %c0_i32 = arith.constant 0 : i32
    %c0_i32_0 = arith.constant 0 : i32
    %c0_i32_1 = arith.constant 0 : i32
    return %c0_i32, %c0_i32_0 : i32, i32
  }
  func.func @transform_12(%arg0: i32) -> (i32, i32) {
    %c0_i32 = arith.constant 0 : i32
    %c0_i32_0 = arith.constant 0 : i32
    %c0_i32_1 = arith.constant 0 : i32
    return %c0_i32, %c0_i32_0 : i32, i32
  }
  func.func @transform_13(%arg0: i32) -> (i32, i32) {
    %c0_i32 = arith.constant 0 : i32
    %c0_i32_0 = arith.constant 0 : i32
    %c0_i32_1 = arith.constant 0 : i32
    return %c0_i32, %c0_i32_0 : i32, i32
  }
  func.func @transform_14(%arg0: i32) -> (i32, i32) {
    %c0_i32 = arith.constant 0 : i32
    %c0_i32_0 = arith.constant 0 : i32
    %c0_i32_1 = arith.constant 0 : i32
    return %c0_i32, %c0_i32_0 : i32, i32
  }
  func.func @transform_15(%arg0: i32) -> (i32, i32) {
    %c0_i32 = arith.constant 0 : i32
    %c0_i32_0 = arith.constant 0 : i32
    return %arg0, %c0_i32 : i32, i32
  }
}

</mosaic_0001>

<llo_original>
// kernel: lenet_forward.1
$region0: #{lenet_forward.1}
  #allocation0 [shape = 'u32[]', space=smem, size = 0x4, offset = 0x4, fixed_abs, tag = 'smem constant byte address 0x4 - core index']
  #allocation1 [shape = 'u32[144,128]{1,0:T(1,128)}', space=vmem, size = 0x12000, scoped, tag = 'internal scratch']
  %s0 = inlined_call_operand.vmem [shape: f32[2,32,32], index: 0, kind: input, shape index: {}]
  %s1 = inlined_call_operand.vmem [shape: bf16[160,168], index: 1, kind: input, shape index: {}]
  %s2 = inlined_call_operand.vmem [shape: f32[1,168], index: 2, kind: input, shape index: {}]
  %s3 = inlined_call_operand.vmem [shape: bf16[168,84], index: 3, kind: input, shape index: {}]
  %s4 = inlined_call_operand.vmem [shape: bf16[28,56], index: 4, kind: input, shape index: {}]
  %s5 = inlined_call_operand.vmem [shape: bf16[420,160], index: 5, kind: input, shape index: {}]
  %s6 = inlined_call_operand.vmem [shape: f32[1,160], index: 6, kind: input, shape index: {}]
  %s7 = inlined_call_operand.vmem [shape: bf16[160,80], index: 7, kind: input, shape index: {}]
  %s8 = inlined_call_operand.vmem [shape: bf16[10,20], index: 8, kind: input, shape index: {}]
  %s9 = inlined_call_operand.vmem [shape: bf16[400,120], index: 9, kind: input, shape index: {}]
  %s10 = inlined_call_operand.vmem [shape: f32[1,120], index: 10, kind: input, shape index: {}]
  %s11 = inlined_call_operand.vmem [shape: bf16[120,84], index: 11, kind: input, shape index: {}]
  %s12 = inlined_call_operand.vmem [shape: f32[1,84], index: 12, kind: input, shape index: {}]
  %s13 = inlined_call_operand.vmem [shape: bf16[84,128], index: 13, kind: input, shape index: {}]
  %s14 = inlined_call_operand.vmem [shape: f32[1,128], index: 14, kind: input, shape index: {}]
  %s15 = inlined_call_operand.hbm [shape: f32[2,128], index: 15, kind: output, shape index: {}]
  %s16 = sld [smem:[#allocation0]]
  $region70: #{lenet_forward.1} parent=0
    _
  %s18 = ssub.s32 1, %s16
  %s19 = scalar_select 0, %s18, %s16
  $region1: #{lenet_forward.1} parent=0
    #allocation2 [shape = 'u8[1024]{0}', space=vmem, size = 0x400, scoped, tag = 'output window, operand 0, single buffered']
    #allocation3 [shape = 's32[1]{0}', space=sflag, size = 0x4, scoped, tag = 'scoped memory for lenet_forward.1']
    %20 = vsyncpa [#allocation3], 0
    // Predicated region
    $region2: #{lenet_forward.1} parent=1 // pred_check
      _
    $region3: #{lenet_forward.1} parent=1 // pred_check_branch
      %22 = sbr.rel (0) target = $region5
    $region4: #{lenet_forward.1} parent=1 // pred_region
      _
    $region5: #{lenet_forward.1} parent=1 // pred_fallthru
      _
    // Predicated region
    $region6: #{lenet_forward.1} parent=1 // pred_check
      _
    $region7: #{lenet_forward.1} parent=1 // pred_check_branch
      %24 = sbr.rel (0) target = $region9
    $region8: #{lenet_forward.1} parent=1 // pred_region
      _
    $region9: #{lenet_forward.1} parent=1 // pred_fallthru
      _
    // Predicated region
    $region10: #{lenet_forward.1} parent=1 // pred_check
      _
    $region11: #{lenet_forward.1} parent=1 // pred_check_branch
      %26 = sbr.rel (0) target = $region13
    $region12: #{lenet_forward.1} parent=1 // pred_region
      _
    $region13: #{lenet_forward.1} parent=1 // pred_fallthru
      _
    // Predicated region
    $region14: #{lenet_forward.1} parent=1 // pred_check
      _
    $region15: #{lenet_forward.1} parent=1 // pred_check_branch
      %28 = sbr.rel (0) target = $region17
    $region16: #{lenet_forward.1} parent=1 // pred_region
      _
    $region17: #{lenet_forward.1} parent=1 // pred_fallthru
      _
    // Predicated region
    $region18: #{lenet_forward.1} parent=1 // pred_check
      _
    $region19: #{lenet_forward.1} parent=1 // pred_check_branch
      %30 = sbr.rel (0) target = $region21
    $region20: #{lenet_forward.1} parent=1 // pred_region
      _
    $region21: #{lenet_forward.1} parent=1 // pred_fallthru
      _
    // Predicated region
    $region22: #{lenet_forward.1} parent=1 // pred_check
      _
    $region23: #{lenet_forward.1} parent=1 // pred_check_branch
      %32 = sbr.rel (0) target = $region25
    $region24: #{lenet_forward.1} parent=1 // pred_region
      _
    $region25: #{lenet_forward.1} parent=1 // pred_fallthru
      _
    // Predicated region
    $region26: #{lenet_forward.1} parent=1 // pred_check
      _
    $region27: #{lenet_forward.1} parent=1 // pred_check_branch
      %34 = sbr.rel (0) target = $region29
    $region28: #{lenet_forward.1} parent=1 // pred_region
      _
    $region29: #{lenet_forward.1} parent=1 // pred_fallthru
      _
    // Predicated region
    $region30: #{lenet_forward.1} parent=1 // pred_check
      _
    $region31: #{lenet_forward.1} parent=1 // pred_check_branch
      %36 = sbr.rel (0) target = $region33
    $region32: #{lenet_forward.1} parent=1 // pred_region
      _
    $region33: #{lenet_forward.1} parent=1 // pred_fallthru
      _
    // Predicated region
    $region34: #{lenet_forward.1} parent=1 // pred_check
      _
    $region35: #{lenet_forward.1} parent=1 // pred_check_branch
      %38 = sbr.rel (0) target = $region37
    $region36: #{lenet_forward.1} parent=1 // pred_region
      _
    $region37: #{lenet_forward.1} parent=1 // pred_fallthru
      _
    // Predicated region
    $region38: #{lenet_forward.1} parent=1 // pred_check
      _
    $region39: #{lenet_forward.1} parent=1 // pred_check_branch
      %40 = sbr.rel (0) target = $region41
    $region40: #{lenet_forward.1} parent=1 // pred_region
      _
    $region41: #{lenet_forward.1} parent=1 // pred_fallthru
      _
    // Predicated region
    $region42: #{lenet_forward.1} parent=1 // pred_check
      _
    $region43: #{lenet_forward.1} parent=1 // pred_check_branch
      %42 = sbr.rel (0) target = $region45
    $region44: #{lenet_forward.1} parent=1 // pred_region
      _
    $region45: #{lenet_forward.1} parent=1 // pred_fallthru
      _
    // Predicated region
    $region46: #{lenet_forward.1} parent=1 // pred_check
      _
    $region47: #{lenet_forward.1} parent=1 // pred_check_branch
      %44 = sbr.rel (0) target = $region49
    $region48: #{lenet_forward.1} parent=1 // pred_region
      _
    $region49: #{lenet_forward.1} parent=1 // pred_fallthru
      _
    // Predicated region
    $region50: #{lenet_forward.1} parent=1 // pred_check
      _
    $region51: #{lenet_forward.1} parent=1 // pred_check_branch
      %46 = sbr.rel (0) target = $region53
    $region52: #{lenet_forward.1} parent=1 // pred_region
      _
    $region53: #{lenet_forward.1} parent=1 // pred_fallthru
      _
    // Predicated region
    $region54: #{lenet_forward.1} parent=1 // pred_check
      _
    $region55: #{lenet_forward.1} parent=1 // pred_check_branch
      %48 = sbr.rel (0) target = $region57
    $region56: #{lenet_forward.1} parent=1 // pred_region
      _
    $region57: #{lenet_forward.1} parent=1 // pred_fallthru
      _
    // Predicated region
    $region58: #{lenet_forward.1} parent=1 // pred_check
      _
    $region59: #{lenet_forward.1} parent=1 // pred_check_branch
      %50 = sbr.rel (0) target = $region61
    $region60: #{lenet_forward.1} parent=1 // pred_region
      _
    $region61: #{lenet_forward.1} parent=1 // pred_fallthru
      _
    %v52 = vld [vmem:[%s0] sm:$0xff]
    %v53 = vld [vmem:[%s0 + $0x8] sm:$0xff]
    %v54 = vld [vmem:[%s0 + $0x10] sm:$0xff]
    %v55 = vld [vmem:[%s0 + $0x18] sm:$0xff]
    %v56 = vld [vmem:[%s0 + $0x20] sm:$0xff]
    %v57 = vld [vmem:[%s0 + $0x28] sm:$0xff]
    %v58 = vld [vmem:[%s0 + $0x30] sm:$0xff]
    %v59 = vld [vmem:[%s0 + $0x38] sm:$0xff]
    %vm64 = vcmask 1046528
    %v65 = vrot.slane %v52, 1
    %v66 = vrot.slane %v53, 1
    %v67 = vsel %vm64, %v65, %v66
    %v68 = vrot.slane %v54, 1
    %v69 = vsel %vm64, %v66, %v68
    %v70 = vrot.slane %v55, 1
    %v71 = vsel %vm64, %v68, %v70
    %72 = vrot.lane.b32.xlu0 %v67, 32
    %v73 = vpop.permute.xlu0 %72
    %74 = vrot.lane.b32.xlu0 %v69, 32
    %v75 = vpop.permute.xlu0 %74
    %76 = vrot.lane.b32.xlu0 %v71, 32
    %v77 = vpop.permute.xlu0 %76
    %78 = vrot.lane.b32.xlu0 %v70, 32
    %v79 = vpop.permute.xlu0 %78
    %vm84 = vcmask 1045504
    %v85 = vrot.slane %v52, 2
    %v86 = vrot.slane %v53, 2
    %v87 = vsel %vm84, %v85, %v86
    %v88 = vrot.slane %v54, 2
    %v89 = vsel %vm84, %v86, %v88
    %v90 = vrot.slane %v55, 2
    %v91 = vsel %vm84, %v88, %v90
    %92 = vrot.lane.b32.xlu0 %v87, 64
    %v93 = vpop.permute.xlu0 %92
    %94 = vrot.lane.b32.xlu0 %v89, 64
    %v95 = vpop.permute.xlu0 %94
    %96 = vrot.lane.b32.xlu0 %v91, 64
    %v97 = vpop.permute.xlu0 %96
    %98 = vrot.lane.b32.xlu0 %v90, 64
    %v99 = vpop.permute.xlu0 %98
    %vm104 = vcmask 1044480
    %v105 = vrot.slane %v52, 3
    %v106 = vrot.slane %v53, 3
    %v107 = vsel %vm104, %v105, %v106
    %v108 = vrot.slane %v54, 3
    %v109 = vsel %vm104, %v106, %v108
    %v110 = vrot.slane %v55, 3
    %v111 = vsel %vm104, %v108, %v110
    %112 = vrot.lane.b32.xlu0 %v107, 96
    %v113 = vpop.permute.xlu0 %112
    %114 = vrot.lane.b32.xlu0 %v109, 96
    %v115 = vpop.permute.xlu0 %114
    %116 = vrot.lane.b32.xlu0 %v111, 96
    %v117 = vpop.permute.xlu0 %116
    %118 = vrot.lane.b32.xlu0 %v110, 96
    %v119 = vpop.permute.xlu0 %118
    %vm124 = vcmask 1043456
    %v125 = vrot.slane %v52, 4
    %v126 = vrot.slane %v53, 4
    %v127 = vsel %vm124, %v125, %v126
    %v128 = vrot.slane %v54, 4
    %v129 = vsel %vm124, %v126, %v128
    %v130 = vrot.slane %v55, 4
    %v131 = vsel %vm124, %v128, %v130
    %vm136 = vcmask 261120
    %v137 = vsel %vm136, %v52, %v73
    %v138 = vsel %vm136, %v53, %v75
    %v139 = vsel %vm136, %v54, %v77
    %v140 = vsel %vm136, %v55, %v79
    %vm141 = vcmask 523264
    %v142 = vsel %vm141, %v137, %v93
    %v143 = vsel %vm141, %v138, %v95
    %v144 = vsel %vm141, %v139, %v97
    %v145 = vsel %vm141, %v140, %v99
    %vm146 = vcmask 785408
    %v147 = vsel %vm146, %v142, %v113
    %v148 = vsel %vm146, %v143, %v115
    %v149 = vsel %vm146, %v144, %v117
    %v150 = vsel %vm146, %v145, %v119
    %v155 = vrot.slane %v56, 1
    %v156 = vrot.slane %v57, 1
    %v157 = vsel %vm64, %v155, %v156
    %v158 = vrot.slane %v58, 1
    %v159 = vsel %vm64, %v156, %v158
    %v160 = vrot.slane %v59, 1
    %v161 = vsel %vm64, %v158, %v160
    %162 = vrot.lane.b32.xlu0 %v157, 32
    %v163 = vpop.permute.xlu0 %162
    %164 = vrot.lane.b32.xlu0 %v159, 32
    %v165 = vpop.permute.xlu0 %164
    %166 = vrot.lane.b32.xlu0 %v161, 32
    %v167 = vpop.permute.xlu0 %166
    %168 = vrot.lane.b32.xlu0 %v160, 32
    %v169 = vpop.permute.xlu0 %168
    %v174 = vrot.slane %v56, 2
    %v175 = vrot.slane %v57, 2
    %v176 = vsel %vm84, %v174, %v175
    %v177 = vrot.slane %v58, 2
    %v178 = vsel %vm84, %v175, %v177
    %v179 = vrot.slane %v59, 2
    %v180 = vsel %vm84, %v177, %v179
    %181 = vrot.lane.b32.xlu0 %v176, 64
    %v182 = vpop.permute.xlu0 %181
    %183 = vrot.lane.b32.xlu0 %v178, 64
    %v184 = vpop.permute.xlu0 %183
    %185 = vrot.lane.b32.xlu0 %v180, 64
    %v186 = vpop.permute.xlu0 %185
    %187 = vrot.lane.b32.xlu0 %v179, 64
    %v188 = vpop.permute.xlu0 %187
    %v193 = vrot.slane %v56, 3
    %v194 = vrot.slane %v57, 3
    %v195 = vsel %vm104, %v193, %v194
    %v196 = vrot.slane %v58, 3
    %v197 = vsel %vm104, %v194, %v196
    %v198 = vrot.slane %v59, 3
    %v199 = vsel %vm104, %v196, %v198
    %200 = vrot.lane.b32.xlu0 %v195, 96
    %v201 = vpop.permute.xlu0 %200
    %202 = vrot.lane.b32.xlu0 %v197, 96
    %v203 = vpop.permute.xlu0 %202
    %204 = vrot.lane.b32.xlu0 %v199, 96
    %v205 = vpop.permute.xlu0 %204
    %206 = vrot.lane.b32.xlu0 %v198, 96
    %v207 = vpop.permute.xlu0 %206
    %v212 = vrot.slane %v56, 4
    %v213 = vrot.slane %v57, 4
    %v214 = vsel %vm124, %v212, %v213
    %v215 = vrot.slane %v58, 4
    %v216 = vsel %vm124, %v213, %v215
    %v217 = vrot.slane %v59, 4
    %v218 = vsel %vm124, %v215, %v217
    %v219 = vsel %vm136, %v56, %v163
    %v220 = vsel %vm136, %v57, %v165
    %v221 = vsel %vm136, %v58, %v167
    %v222 = vsel %vm136, %v59, %v169
    %v223 = vsel %vm141, %v219, %v182
    %v224 = vsel %vm141, %v220, %v184
    %v225 = vsel %vm141, %v221, %v186
    %v226 = vsel %vm141, %v222, %v188
    %v227 = vsel %vm146, %v223, %v201
    %v228 = vsel %vm146, %v224, %v203
    %v229 = vsel %vm146, %v225, %v205
    %v230 = vsel %vm146, %v226, %v207
    %v235 = vrot.slane %v227, 4
    %v236 = vrot.slane %v214, 4
    %v237 = vrot.slane %v228, 4
    %v238 = vsel %vm124, %v235, %v237
    %v239 = vrot.slane %v216, 4
    %v240 = vsel %vm124, %v236, %v239
    %v241 = vrot.slane %v229, 4
    %v242 = vsel %vm124, %v237, %v241
    %v243 = vrot.slane %v218, 4
    %v244 = vsel %vm124, %v239, %v243
    %v245 = vrot.slane %v230, 4
    %v246 = vsel %vm124, %v241, %v245
    %v247 = vrot.slane %v217, 4
    %v248 = vsel %vm124, %v243, %v247
    %v257 = vsel %vm124, %v150, %v235
    %v258 = vsel %vm124, %v130, %v236
    %v259 = vld [vmem:[%s1] sm:$0xff]
    %v260 = vld [vmem:[%s1 + $0x8] sm:$0xff]
    %v261 = vld [vmem:[%s1 + $0x10] sm:$0xff]
    %v262 = vld [vmem:[%s1 + $0x18] sm:$0xff]
    %v263 = vld [vmem:[%s1 + $0x20] sm:$0xff]
    %v264 = vld [vmem:[%s1 + $0x28] sm:$0xff]
    %v265 = vld [vmem:[%s1 + $0x30] sm:$0xff]
    %v266 = vld [vmem:[%s1 + $0x38] sm:$0xff]
    %v267 = vld [vmem:[%s1 + $0x40] sm:$0xff]
    %v268 = vld [vmem:[%s1 + $0x48] sm:$0xff]
    %v269 = vld [vmem:[%s1 + $0x50] sm:$0xff]
    %v270 = vld [vmem:[%s1 + $0x58] sm:$0xff]
    %v271 = vld [vmem:[%s1 + $0x60] sm:$0xff]
    %v272 = vld [vmem:[%s1 + $0x68] sm:$0xff]
    %v273 = vld [vmem:[%s1 + $0x70] sm:$0xff]
    %v274 = vld [vmem:[%s1 + $0x78] sm:$0xff]
    %v275 = vld [vmem:[%s1 + $0x80] sm:$0xff]
    %v276 = vld [vmem:[%s1 + $0x88] sm:$0xff]
    %v277 = vld [vmem:[%s1 + $0x90] sm:$0xff]
    %v278 = vld [vmem:[%s1 + $0x98] sm:$0xff]
    %v279 = vpack.c.bf16 %v148, %v147
    %v280 = vpack.c.bf16 %v129, %v127
    %v281 = vpack.c.bf16 %v257, %v149
    %v282 = vpack.c.bf16 %v258, %v131
    %v283 = vpack.c.bf16 %v242, %v238
    %v284 = vpack.c.bf16 %v244, %v240
    %v285 = vpack.c.bf16 %v246, %v246
    %v286 = vpack.c.bf16 %v248, %v248
    %v287 = vld [vmem:[%s2] sm:$0x3]
    %v289 = vlaneseq
    %v290 = vshrl.u32 %v289, 7
    %v291 = vsub.s32 0, %v290
    %v292 = vrot.slane %v287, %v291
    %v293 = vlaneseq
    %v294 = vshrl.u32 %v293, 7
    %v295 = vsub.s32 1, %v294
    %v296 = vrot.slane %v287, %v295
    %v319 = vunpack.c.l.b16 %v259
    %v320 = vunpack.c.h.b16 %v259
    %v321 = vunpack.c.l.b16 %v260
    %v322 = vunpack.c.h.b16 %v260
    %v323 = vunpack.c.l.b16 %v261
    %v324 = vunpack.c.h.b16 %v261
    %v325 = vunpack.c.l.b16 %v262
    %v326 = vunpack.c.h.b16 %v262
    %v327 = vunpack.c.l.b16 %v263
    %v328 = vunpack.c.h.b16 %v263
    %v329 = vunpack.c.l.b16 %v264
    %v330 = vunpack.c.h.b16 %v264
    %v331 = vunpack.c.l.b16 %v265
    %v332 = vunpack.c.h.b16 %v265
    %v333 = vunpack.c.l.b16 %v266
    %v334 = vunpack.c.h.b16 %v266
    %v335 = vunpack.c.l.b16 %v267
    %v336 = vunpack.c.h.b16 %v267
    %v337 = vunpack.c.l.b16 %v268
    %v338 = vunpack.c.h.b16 %v268
    %v339 = vunpack.c.l.b16 %v269
    %v340 = vunpack.c.h.b16 %v269
    %v341 = vunpack.c.l.b16 %v270
    %v342 = vunpack.c.h.b16 %v270
    %v343 = vunpack.c.l.b16 %v271
    %v344 = vunpack.c.h.b16 %v271
    %v345 = vunpack.c.l.b16 %v272
    %v346 = vunpack.c.h.b16 %v272
    %v347 = vunpack.c.l.b16 %v273
    %v348 = vunpack.c.h.b16 %v273
    %v349 = vunpack.c.l.b16 %v274
    %v350 = vunpack.c.h.b16 %v274
    %v351 = vunpack.c.l.b16 %v275
    %v352 = vunpack.c.h.b16 %v275
    %v353 = vunpack.c.l.b16 %v276
    %v354 = vunpack.c.h.b16 %v276
    %v355 = vunpack.c.l.b16 %v277
    %v356 = vunpack.c.h.b16 %v277
    %v357 = vunpack.c.l.b16 %v278
    %v358 = vunpack.c.h.b16 %v278
    %v359 = vpack.c.b16 %v321, %v319
    %v360 = vpack.c.b16 %v322, %v320
    %v361 = vpack.c.b16 %v325, %v323
    %v362 = vpack.c.b16 %v326, %v324
    %v363 = vpack.c.b16 %v329, %v327
    %v364 = vpack.c.b16 %v330, %v328
    %v365 = vpack.c.b16 %v333, %v331
    %v366 = vpack.c.b16 %v334, %v332
    %v367 = vpack.c.b16 %v337, %v335
    %v368 = vpack.c.b16 %v338, %v336
    %v369 = vpack.c.b16 %v341, %v339
    %v370 = vpack.c.b16 %v342, %v340
    %v371 = vpack.c.b16 %v345, %v343
    %v372 = vpack.c.b16 %v346, %v344
    %v373 = vpack.c.b16 %v349, %v347
    %v374 = vpack.c.b16 %v350, %v348
    %v375 = vpack.c.b16 %v353, %v351
    %v376 = vpack.c.b16 %v354, %v352
    %v377 = vpack.c.b16 %v357, %v355
    %v378 = vpack.c.b16 %v358, %v356
    %v400 = vsel %vm136, %v280, 0
    %v403 = vsel %vm136, %v282, 0
    %v406 = vsel %vm136, %v284, 0
    %v409 = vsel %vm136, %v286, 0
    %411 = vmatprep.subr.bf16.mxu0 %v360
    %412 = vmatpush1.bf16.msra.mxu0 %v359
    %413 = vmatprep.subr.bf16.mxu0 %v362
    %414 = vmatpush1.bf16.msra.mxu0 %v361
    %415 = vmatprep.subr.bf16.mxu0 %v364
    %416 = vmatpush1.bf16.msra.mxu0 %v363
    %417 = vmatprep.subr.bf16.mxu0 %v366
    %418 = vmatpush1.bf16.msra.mxu0 %v365
    %419 = vmatprep.subr.bf16.mxu0 %v368
    %420 = vmatpush1.bf16.msra.mxu0 %v367
    %421 = vmatprep.subr.bf16.mxu0 %v370
    %422 = vmatpush1.bf16.msra.mxu0 %v369
    %423 = vmatprep.subr.bf16.mxu0 %v372
    %424 = vmatpush1.bf16.msra.mxu0 %v371
    %425 = vmatprep.subr.bf16.mxu0 %v374
    %426 = vmatpush1.bf16.msra.mxu0 %v373
    %427 = vmatprep.subr.bf16.mxu0 %v376
    %428 = vmatpush1.bf16.msra.mxu0 %v375
    %429 = vmatprep.subr.bf16.mxu0 %v378
    %430 = vmatpush1.bf16.msra.mxu0 %v377
    %431 = vmatprep.subr.bf16.mxu0 0
    %432 = vmatpush1.bf16.msra.mxu0 0
    %433 = vmatprep.subr.bf16.mxu0 0
    %434 = vmatpush1.bf16.msra.mxu0 0
    %435 = vmatprep.subr.bf16.mxu0 0
    %436 = vmatpush1.bf16.msra.mxu0 0
    %437 = vmatprep.subr.bf16.mxu0 0
    %438 = vmatpush1.bf16.msra.mxu0 0
    %439 = vmatprep.subr.bf16.mxu0 0
    %440 = vmatpush1.bf16.msra.mxu0 0
    %441 = vmatprep.subr.bf16.mxu0 0
    %442 = vmatpush1.bf16.msra.mxu0 0
    %443 = vmatprep.mubr.bf16.mxu0 %v400
    %444 = vmatmul.mubr.bf16.gmra.mrb[0].mxu0 %v279
    %v445 = vpop.f32.mrb[0].mxu0
    %v446 = vadd.f32 %v292, %v445
    %v447 = vpop.f32.mrb[0].mxu0
    %v448 = vadd.f32 %v296, %v447
    %v449 = vpop.f32.mrb[0].mxu0
    %v450 = vadd.f32 %v292, %v449
    %v451 = vpop.f32.mrb[0].mxu0
    %v452 = vadd.f32 %v296, %v451
    %453 = vmatprep.mubr.bf16.mxu0 %v403
    %454 = vmatmul.mubr.bf16.gmra.mrb[0].mxu0 %v281
    %v455 = vpop.f32.mrb[0].mxu0
    %v456 = vadd.f32 %v292, %v455
    %v457 = vpop.f32.mrb[0].mxu0
    %v458 = vadd.f32 %v296, %v457
    %v459 = vpop.f32.mrb[0].mxu0
    %v460 = vadd.f32 %v292, %v459
    %v461 = vpop.f32.mrb[0].mxu0
    %v462 = vadd.f32 %v296, %v461
    %463 = vmatprep.mubr.bf16.mxu0 %v406
    %464 = vmatmul.mubr.bf16.gmra.mrb[0].mxu0 %v283
    %v465 = vpop.f32.mrb[0].mxu0
    %v466 = vadd.f32 %v292, %v465
    %v467 = vpop.f32.mrb[0].mxu0
    %v468 = vadd.f32 %v296, %v467
    %v469 = vpop.f32.mrb[0].mxu0
    %v470 = vadd.f32 %v292, %v469
    %v471 = vpop.f32.mrb[0].mxu0
    %v472 = vadd.f32 %v296, %v471
    %473 = vmatprep.mubr.bf16.mxu0 %v409
    %474 = vmatmul.mubr.bf16.gmra.mrb[0].mxu0 %v285
    %v475 = vpop.f32.mrb[0].mxu0
    %v476 = vadd.f32 %v292, %v475
    %v477 = vpop.f32.mrb[0].mxu0
    %v478 = vadd.f32 %v296, %v477
    %v479 = vpop.f32.mrb[0].mxu0
    %v480 = vpop.f32.mrb[0].mxu0
    %481 = vdwg.mxu0
    %v482 = vmax.f32 %v446, 0.0
    %v483 = vmax.f32 %v448, 0.0
    %v484 = vmax.f32 %v450, 0.0
    %v485 = vmax.f32 %v452, 0.0
    %v486 = vmax.f32 %v456, 0.0
    %v487 = vmax.f32 %v458, 0.0
    %v488 = vmax.f32 %v460, 0.0
    %v489 = vmax.f32 %v462, 0.0
    %v490 = vmax.f32 %v466, 0.0
    %v491 = vmax.f32 %v468, 0.0
    %v492 = vmax.f32 %v470, 0.0
    %v493 = vmax.f32 %v472, 0.0
    %v494 = vmax.f32 %v476, 0.0
    %v495 = vmax.f32 %v478, 0.0
    %v496 = vld [vmem:[%s4] sm:$0xf]
    %v497 = vld [vmem:[%s4 + $0x4] sm:$0xf]
    %v498 = vld [vmem:[%s4 + $0x8] sm:$0xf]
    %v499 = vld [vmem:[%s4 + $0xc] sm:$0x3]
    %v500 = vld [vmem:[%s3] sm:$0xf]
    %v501 = vld [vmem:[%s3 + $0x4] sm:$0xf]
    %v502 = vld [vmem:[%s3 + $0x8] sm:$0xf]
    %v503 = vld [vmem:[%s3 + $0xc] sm:$0xf]
    %v504 = vld [vmem:[%s3 + $0x10] sm:$0xf]
    %v505 = vld [vmem:[%s3 + $0x14] sm:$0xf]
    %v506 = vld [vmem:[%s3 + $0x18] sm:$0xf]
    %v507 = vld [vmem:[%s3 + $0x1c] sm:$0xf]
    %v508 = vld [vmem:[%s3 + $0x20] sm:$0xf]
    %v509 = vld [vmem:[%s3 + $0x24] sm:$0xf]
    %v510 = vld [vmem:[%s3 + $0x28] sm:$0xf]
    %v511 = vld [vmem:[%s3 + $0x2c] sm:$0xf]
    %v512 = vld [vmem:[%s3 + $0x30] sm:$0xf]
    %v513 = vld [vmem:[%s3 + $0x34] sm:$0xf]
    %v514 = vld [vmem:[%s3 + $0x38] sm:$0xf]
    %v515 = vld [vmem:[%s3 + $0x3c] sm:$0xf]
    %v516 = vld [vmem:[%s3 + $0x40] sm:$0xf]
    %v517 = vld [vmem:[%s3 + $0x44] sm:$0xf]
    %v518 = vld [vmem:[%s3 + $0x48] sm:$0xf]
    %v519 = vld [vmem:[%s3 + $0x4c] sm:$0xf]
    %v520 = vld [vmem:[%s3 + $0x50] sm:$0xf]
    %v521 = vpack.c.bf16 %v484, %v482
    %v522 = vpack.c.bf16 %v485, %v483
    %v523 = vpack.c.bf16 %v488, %v486
    %v524 = vpack.c.bf16 %v489, %v487
    %v525 = vpack.c.bf16 %v492, %v490
    %v526 = vpack.c.bf16 %v493, %v491
    %v527 = vpack.c.bf16 %v494, %v494
    %v528 = vpack.c.bf16 %v495, %v495
    %v550 = vunpack.c.l.b16 %v500
    %v551 = vunpack.c.l.b16 %v501
    %v552 = vunpack.c.l.b16 %v502
    %v553 = vunpack.c.l.b16 %v503
    %v554 = vunpack.c.l.b16 %v504
    %v555 = vunpack.c.l.b16 %v505
    %v556 = vunpack.c.l.b16 %v506
    %v557 = vunpack.c.l.b16 %v507
    %v558 = vunpack.c.l.b16 %v508
    %v559 = vunpack.c.l.b16 %v509
    %v560 = vunpack.c.l.b16 %v510
    %v561 = vunpack.c.l.b16 %v511
    %v562 = vunpack.c.l.b16 %v512
    %v563 = vunpack.c.l.b16 %v513
    %v564 = vunpack.c.l.b16 %v514
    %v565 = vunpack.c.l.b16 %v515
    %v566 = vunpack.c.l.b16 %v516
    %v567 = vunpack.c.l.b16 %v517
    %v568 = vunpack.c.l.b16 %v518
    %v569 = vunpack.c.l.b16 %v519
    %v570 = vunpack.c.l.b16 %v520
    %v571 = vpack.c.b16 %v551, %v550
    %v572 = vpack.c.b16 %v553, %v552
    %v573 = vpack.c.b16 %v555, %v554
    %v574 = vpack.c.b16 %v557, %v556
    %v575 = vpack.c.b16 %v559, %v558
    %v576 = vpack.c.b16 %v561, %v560
    %v577 = vpack.c.b16 %v563, %v562
    %v578 = vpack.c.b16 %v565, %v564
    %v579 = vpack.c.b16 %v567, %v566
    %v580 = vpack.c.b16 %v569, %v568
    %v581 = vpack.c.b16 %v570, %v570
    %vm592 = vcmask 326656
    %v594 = vsel %vm592, %v522, 0
    %v597 = vsel %vm592, %v524, 0
    %v600 = vsel %vm592, %v526, 0
    %v603 = vsel %vm592, %v528, 0
    %v606 = vsel %vm124, %v581, 0
    %608 = vmatprep.subr.bf16.mxu0 0
    %609 = vmatpush1.bf16.msra.mxu0 %v571
    %610 = vmatprep.subr.bf16.mxu0 0
    %611 = vmatpush1.bf16.msra.mxu0 %v572
    %612 = vmatprep.subr.bf16.mxu0 0
    %613 = vmatpush1.bf16.msra.mxu0 %v573
    %614 = vmatprep.subr.bf16.mxu0 0
    %615 = vmatpush1.bf16.msra.mxu0 %v574
    %616 = vmatprep.subr.bf16.mxu0 0
    %617 = vmatpush1.bf16.msra.mxu0 %v575
    %618 = vmatprep.subr.bf16.mxu0 0
    %619 = vmatpush1.bf16.msra.mxu0 %v576
    %620 = vmatprep.subr.bf16.mxu0 0
    %621 = vmatpush1.bf16.msra.mxu0 %v577
    %622 = vmatprep.subr.bf16.mxu0 0
    %623 = vmatpush1.bf16.msra.mxu0 %v578
    %624 = vmatprep.subr.bf16.mxu0 0
    %625 = vmatpush1.bf16.msra.mxu0 %v579
    %626 = vmatprep.subr.bf16.mxu0 0
    %627 = vmatpush1.bf16.msra.mxu0 %v580
    %628 = vmatprep.subr.bf16.mxu0 0
    %629 = vmatpush1.bf16.msra.mxu0 %v606
    %630 = vmatprep.subr.bf16.mxu0 0
    %631 = vmatpush1.bf16.msra.mxu0 0
    %632 = vmatprep.subr.bf16.mxu0 0
    %633 = vmatpush1.bf16.msra.mxu0 0
    %634 = vmatprep.subr.bf16.mxu0 0
    %635 = vmatpush1.bf16.msra.mxu0 0
    %636 = vmatprep.subr.bf16.mxu0 0
    %637 = vmatpush1.bf16.msra.mxu0 0
    %638 = vmatprep.subr.bf16.mxu0 0
    %639 = vmatpush1.bf16.msra.mxu0 0
    %640 = vmatprep.mubr.bf16.mxu0 %v594
    %641 = vmatmul.mubr.bf16.gmra.mrb[0].mxu0 %v521
    %v642 = vpop.f32.mrb[0].mxu0
    %v643 = vadd.f32 0.0, %v642
    %v644 = vpop.f32.mrb[0].mxu0
    %v645 = vpop.f32.mrb[0].mxu0
    %v646 = vadd.f32 0.0, %v645
    %v647 = vpop.f32.mrb[0].mxu0
    %648 = vmatprep.mubr.bf16.mxu0 %v597
    %649 = vmatmul.mubr.bf16.gmra.mrb[0].mxu0 %v523
    %v650 = vpop.f32.mrb[0].mxu0
    %v651 = vadd.f32 0.0, %v650
    %v652 = vpop.f32.mrb[0].mxu0
    %v653 = vpop.f32.mrb[0].mxu0
    %v654 = vadd.f32 0.0, %v653
    %v655 = vpop.f32.mrb[0].mxu0
    %656 = vmatprep.mubr.bf16.mxu0 %v600
    %657 = vmatmul.mubr.bf16.gmra.mrb[0].mxu0 %v525
    %v658 = vpop.f32.mrb[0].mxu0
    %v659 = vadd.f32 0.0, %v658
    %v660 = vpop.f32.mrb[0].mxu0
    %v661 = vpop.f32.mrb[0].mxu0
    %v662 = vadd.f32 0.0, %v661
    %v663 = vpop.f32.mrb[0].mxu0
    %664 = vmatprep.mubr.bf16.mxu0 %v603
    %665 = vmatmul.mubr.bf16.gmra.mrb[0].mxu0 %v527
    %v666 = vpop.f32.mrb[0].mxu0
    %v667 = vadd.f32 0.0, %v666
    %v668 = vpop.f32.mrb[0].mxu0
    %v669 = vpop.f32.mrb[0].mxu0
    %v670 = vpop.f32.mrb[0].mxu0
    %671 = vdwg.mxu0
    %v672 = vpack.c.bf16 %v646, %v643
    %v673 = vpack.c.bf16 %v654, %v651
    %v674 = vpack.c.bf16 %v662, %v659
    %v675 = vpack.c.bf16 %v667, %v667
    %v680 = vunpack.c.l.b16 %v496
    %v681 = vunpack.c.l.b16 %v497
    %v682 = vunpack.c.l.b16 %v498
    %v683 = vunpack.c.l.b16 %v499
    %v684 = vpack.c.b16 %v681, %v680
    %v685 = vpack.c.b16 %v683, %v682
    %vm686 = vcmask 457728
    %v688 = vsel %vm686, %v684, 0
    %v691 = vsel %vm686, %v685, 0
    %v694 = vsel %vm124, %v675, 0
    %696 = vmatprep.subr.bf16.mxu0 0
    %697 = vmatpush1.bf16.msra.mxu0 %v672
    %698 = vmatprep.subr.bf16.mxu0 0
    %699 = vmatpush1.bf16.msra.mxu0 %v673
    %700 = vmatprep.subr.bf16.mxu0 0
    %701 = vmatpush1.bf16.msra.mxu0 %v674
    %702 = vmatprep.subr.bf16.mxu0 0
    %703 = vmatpush1.bf16.msra.mxu0 %v694
    %704 = vmatprep.subr.bf16.mxu0 0
    %705 = vmatpush1.bf16.msra.mxu0 0
    %706 = vmatprep.subr.bf16.mxu0 0
    %707 = vmatpush1.bf16.msra.mxu0 0
    %708 = vmatprep.subr.bf16.mxu0 0
    %709 = vmatpush1.bf16.msra.mxu0 0
    %710 = vmatprep.subr.bf16.mxu0 0
    %711 = vmatpush1.bf16.msra.mxu0 0
    %712 = vmatprep.subr.bf16.mxu0 0
    %713 = vmatpush1.bf16.msra.mxu0 0
    %714 = vmatprep.subr.bf16.mxu0 0
    %715 = vmatpush1.bf16.msra.mxu0 0
    %716 = vmatprep.subr.bf16.mxu0 0
    %717 = vmatpush1.bf16.msra.mxu0 0
    %718 = vmatprep.subr.bf16.mxu0 0
    %719 = vmatpush1.bf16.msra.mxu0 0
    %720 = vmatprep.subr.bf16.mxu0 0
    %721 = vmatpush1.bf16.msra.mxu0 0
    %722 = vmatprep.subr.bf16.mxu0 0
    %723 = vmatpush1.bf16.msra.mxu0 0
    %724 = vmatprep.subr.bf16.mxu0 0
    %725 = vmatpush1.bf16.msra.mxu0 0
    %726 = vmatprep.subr.bf16.mxu0 0
    %727 = vmatpush1.bf16.msra.mxu0 0
    %728 = vmatprep.mubr.bf16.mxu0 0
    %729 = vmatmul.mubr.bf16.gmra.mrb[0].mxu0 %v688
    %v730 = vpop.f32.mrb[0].mxu0
    %v731 = vadd.f32 0.0, %v730
    %v732 = vpop.f32.mrb[0].mxu0
    %v733 = vpop.f32.mrb[0].mxu0
    %v734 = vadd.f32 0.0, %v733
    %v735 = vpop.f32.mrb[0].mxu0
    %736 = vmatprep.mubr.bf16.mxu0 0
    %737 = vmatmul.mubr.bf16.gmra.mrb[0].mxu0 %v691
    %v738 = vpop.f32.mrb[0].mxu0
    %v739 = vadd.f32 0.0, %v738
    %v740 = vpop.f32.mrb[0].mxu0
    %v741 = vpop.f32.mrb[0].mxu0
    %v742 = vadd.f32 0.0, %v741
    %v743 = vpop.f32.mrb[0].mxu0
    %744 = vdwg.mxu0
    %v747 = vrot.slane %v731, 1
    %v748 = vrot.slane %v734, 1
    %v749 = vsel %vm64, %v747, %v748
    %750 = vrot.lane.b32.xlu0 %v749, 84
    %v751 = vpop.permute.xlu0 %750
    %752 = vrot.lane.b32.xlu0 %v748, 84
    %v753 = vpop.permute.xlu0 %752
    %v756 = vrot.slane %v731, 2
    %v757 = vrot.slane %v734, 2
    %v758 = vsel %vm84, %v756, %v757
    %759 = vrot.lane.b32.xlu0 %v758, 40
    %v760 = vpop.permute.xlu0 %759
    %761 = vrot.lane.b32.xlu0 %v757, 40
    %v762 = vpop.permute.xlu0 %761
    %v765 = vrot.slane %v731, 3
    %v766 = vrot.slane %v734, 3
    %v767 = vsel %vm104, %v765, %v766
    %768 = vrot.lane.b32.xlu0 %v767, 124
    %v769 = vpop.permute.xlu0 %768
    %770 = vrot.lane.b32.xlu0 %v766, 124
    %v771 = vpop.permute.xlu0 %770
    %v774 = vrot.slane %v731, 4
    %v775 = vrot.slane %v734, 4
    %v776 = vsel %vm124, %v774, %v775
    %777 = vrot.lane.b32.xlu0 %v776, 80
    %v778 = vpop.permute.xlu0 %777
    %779 = vrot.lane.b32.xlu0 %v775, 80
    %v780 = vpop.permute.xlu0 %779
    %vm783 = vcmask 687104
    %v784 = vsel %vm783, %v731, %v751
    %v785 = vsel %vm783, %v734, %v753
    %v786 = vsel %vm592, %v751, %v760
    %v787 = vsel %vm592, %v753, %v762
    %vm788 = vcmask 1014784
    %v789 = vsel %vm788, %v786, %v769
    %v790 = vsel %vm788, %v787, %v771
    %vm791 = vcmask 654336
    %v792 = vsel %vm791, %v769, %v778
    %v793 = vsel %vm791, %v771, %v780
    %v796 = vrot.slane %v739, 1
    %v797 = vsel %vm64, %v748, %v796
    %v798 = vrot.slane %v742, 1
    %v799 = vsel %vm64, %v796, %v798
    %800 = vrot.lane.b32.xlu0 %v797, 84
    %v801 = vpop.permute.xlu0 %800
    %802 = vrot.lane.b32.xlu0 %v799, 84
    %v803 = vpop.permute.xlu0 %802
    %v806 = vrot.slane %v739, 2
    %v807 = vrot.slane %v742, 2
    %v808 = vsel %vm84, %v806, %v807
    %809 = vrot.lane.b32.xlu0 %v806, 40
    %v810 = vpop.permute.xlu0 %809
    %811 = vrot.lane.b32.xlu0 %v808, 40
    %v812 = vpop.permute.xlu0 %811
    %v815 = vrot.slane %v739, 3
    %v816 = vrot.slane %v742, 3
    %v817 = vsel %vm104, %v815, %v816
    %818 = vrot.lane.b32.xlu0 %v815, 124
    %v819 = vpop.permute.xlu0 %818
    %820 = vrot.lane.b32.xlu0 %v817, 124
    %v821 = vpop.permute.xlu0 %820
    %v824 = vrot.slane %v739, 4
    %v825 = vrot.slane %v742, 4
    %v826 = vsel %vm124, %v824, %v825
    %827 = vrot.lane.b32.xlu0 %v824, 80
    %v828 = vpop.permute.xlu0 %827
    %829 = vrot.lane.b32.xlu0 %v826, 80
    %v830 = vpop.permute.xlu0 %829
    %v833 = vsel %vm783, %v734, %v801
    %v834 = vsel %vm783, %v739, %v803
    %v835 = vsel %vm592, %v801, %v810
    %v836 = vsel %vm592, %v803, %v812
    %v837 = vsel %vm788, %v835, %v819
    %v838 = vsel %vm788, %v836, %v821
    %v839 = vsel %vm791, %v819, %v828
    %v840 = vsel %vm791, %v821, %v830
    %v847 = vrot.slane %v833, 4
    %v848 = vrot.slane %v834, 4
    %v849 = vsel %vm124, %v847, %v848
    %v850 = vrot.slane %v837, 4
    %v851 = vrot.slane %v838, 4
    %v852 = vsel %vm124, %v850, %v851
    %v853 = vrot.slane %v839, 4
    %v854 = vrot.slane %v840, 4
    %v855 = vsel %vm124, %v853, %v854
    %v856 = vrot.slane %v828, 4
    %v857 = vrot.slane %v830, 4
    %v858 = vsel %vm124, %v856, %v857
    %vm867 = vcmask 1041408
    %v868 = vsel %vm867, %v785, %v849
    %v869 = vsel %vm867, %v790, %v852
    %v870 = vsel %vm867, %v793, %v855
    %v871 = vsel %vm867, %v780, %v858
    %v872 = vld [vmem:[%s5] sm:$0xff]
    %v873 = vld [vmem:[%s5 + $0x8] sm:$0xff]
    %v874 = vld [vmem:[%s5 + $0x10] sm:$0xff]
    %v875 = vld [vmem:[%s5 + $0x18] sm:$0xff]
    %v876 = vld [vmem:[%s5 + $0x20] sm:$0xff]
    %v877 = vld [vmem:[%s5 + $0x28] sm:$0xff]
    %v878 = vld [vmem:[%s5 + $0x30] sm:$0xff]
    %v879 = vld [vmem:[%s5 + $0x38] sm:$0xff]
    %v880 = vld [vmem:[%s5 + $0x40] sm:$0xff]
    %v881 = vld [vmem:[%s5 + $0x48] sm:$0xff]
    %v882 = vld [vmem:[%s5 + $0x50] sm:$0xff]
    %v883 = vld [vmem:[%s5 + $0x58] sm:$0xff]
    %v884 = vld [vmem:[%s5 + $0x60] sm:$0xff]
    %v885 = vld [vmem:[%s5 + $0x68] sm:$0xff]
    %v886 = vld [vmem:[%s5 + $0x70] sm:$0xff]
    %v887 = vld [vmem:[%s5 + $0x78] sm:$0xff]
    %v888 = vld [vmem:[%s5 + $0x80] sm:$0xff]
    %v889 = vld [vmem:[%s5 + $0x88] sm:$0xff]
    %v890 = vld [vmem:[%s5 + $0x90] sm:$0xff]
    %v891 = vld [vmem:[%s5 + $0x98] sm:$0xff]
    %v892 = vld [vmem:[%s5 + $0xa0] sm:$0xff]
    %v893 = vld [vmem:[%s5 + $0xa8] sm:$0xff]
    %v894 = vld [vmem:[%s5 + $0xb0] sm:$0xff]
    %v895 = vld [vmem:[%s5 + $0xb8] sm:$0xff]
    %v896 = vld [vmem:[%s5 + $0xc0] sm:$0xff]
    %v897 = vld [vmem:[%s5 + $0xc8] sm:$0xff]
    %v898 = vld [vmem:[%s5 + $0xd0] sm:$0xff]
    %v899 = vld [vmem:[%s5 + $0xd8] sm:$0xff]
    %v900 = vld [vmem:[%s5 + $0xe0] sm:$0xff]
    %v901 = vld [vmem:[%s5 + $0xe8] sm:$0xff]
    %v902 = vld [vmem:[%s5 + $0xf0] sm:$0xff]
    %v903 = vld [vmem:[%s5 + $0xf8] sm:$0xff]
    %v904 = vld [vmem:[%s5 + $0x100] sm:$0xff]
    %v905 = vld [vmem:[%s5 + $0x108] sm:$0xff]
    %v906 = vld [vmem:[%s5 + $0x110] sm:$0xff]
    %v907 = vld [vmem:[%s5 + $0x118] sm:$0xff]
    %v908 = vld [vmem:[%s5 + $0x120] sm:$0xff]
    %v909 = vld [vmem:[%s5 + $0x128] sm:$0xff]
    %v910 = vld [vmem:[%s5 + $0x130] sm:$0xff]
    %v911 = vld [vmem:[%s5 + $0x138] sm:$0xff]
    %v912 = vld [vmem:[%s5 + $0x140] sm:$0xff]
    %v913 = vld [vmem:[%s5 + $0x148] sm:$0xff]
    %v914 = vld [vmem:[%s5 + $0x150] sm:$0xff]
    %v915 = vld [vmem:[%s5 + $0x158] sm:$0xff]
    %v916 = vld [vmem:[%s5 + $0x160] sm:$0xff]
    %v917 = vld [vmem:[%s5 + $0x168] sm:$0xff]
    %v918 = vld [vmem:[%s5 + $0x170] sm:$0xff]
    %v919 = vld [vmem:[%s5 + $0x178] sm:$0xff]
    %v920 = vld [vmem:[%s5 + $0x180] sm:$0xff]
    %v921 = vld [vmem:[%s5 + $0x188] sm:$0xff]
    %v922 = vld [vmem:[%s5 + $0x190] sm:$0xff]
    %v923 = vld [vmem:[%s5 + $0x198] sm:$0xff]
    %v924 = vld [vmem:[%s5 + $0x1a0] sm:$0x33]
    %v925 = vpack.c.bf16 %v868, %v784
    %v926 = vpack.c.bf16 %v869, %v789
    %v927 = vpack.c.bf16 %v870, %v792
    %v928 = vpack.c.bf16 %v871, %v778
    %v929 = vpack.c.bf16 %v848, %v848
    %v930 = vpack.c.bf16 %v851, %v851
    %v931 = vpack.c.bf16 %v854, %v854
    %v932 = vpack.c.bf16 %v857, %v857
    %v933 = vld [vmem:[%s6] sm:$0x3]
    %v935 = vlaneseq
    %v936 = vshrl.u32 %v935, 7
    %v937 = vsub.s32 0, %v936
    %v938 = vrot.slane %v933, %v937
    %v939 = vlaneseq
    %v940 = vshrl.u32 %v939, 7
    %v941 = vsub.s32 1, %v940
    %v942 = vrot.slane %v933, %v941
    %v998 = vunpack.c.l.b16 %v872
    %v999 = vunpack.c.h.b16 %v872
    %v1000 = vunpack.c.l.b16 %v873
    %v1001 = vunpack.c.h.b16 %v873
    %v1002 = vunpack.c.l.b16 %v874
    %v1003 = vunpack.c.h.b16 %v874
    %v1004 = vunpack.c.l.b16 %v875
    %v1005 = vunpack.c.h.b16 %v875
    %v1006 = vunpack.c.l.b16 %v876
    %v1007 = vunpack.c.h.b16 %v876
    %v1008 = vunpack.c.l.b16 %v877
    %v1009 = vunpack.c.h.b16 %v877
    %v1010 = vunpack.c.l.b16 %v878
    %v1011 = vunpack.c.h.b16 %v878
    %v1012 = vunpack.c.l.b16 %v879
    %v1013 = vunpack.c.h.b16 %v879
    %v1014 = vunpack.c.l.b16 %v880
    %v1015 = vunpack.c.h.b16 %v880
    %v1016 = vunpack.c.l.b16 %v881
    %v1017 = vunpack.c.h.b16 %v881
    %v1018 = vunpack.c.l.b16 %v882
    %v1019 = vunpack.c.h.b16 %v882
    %v1020 = vunpack.c.l.b16 %v883
    %v1021 = vunpack.c.h.b16 %v883
    %v1022 = vunpack.c.l.b16 %v884
    %v1023 = vunpack.c.h.b16 %v884
    %v1024 = vunpack.c.l.b16 %v885
    %v1025 = vunpack.c.h.b16 %v885
    %v1026 = vunpack.c.l.b16 %v886
    %v1027 = vunpack.c.h.b16 %v886
    %v1028 = vunpack.c.l.b16 %v887
    %v1029 = vunpack.c.h.b16 %v887
    %v1030 = vunpack.c.l.b16 %v888
    %v1031 = vunpack.c.h.b16 %v888
    %v1032 = vunpack.c.l.b16 %v889
    %v1033 = vunpack.c.h.b16 %v889
    %v1034 = vunpack.c.l.b16 %v890
    %v1035 = vunpack.c.h.b16 %v890
    %v1036 = vunpack.c.l.b16 %v891
    %v1037 = vunpack.c.h.b16 %v891
    %v1038 = vunpack.c.l.b16 %v892
    %v1039 = vunpack.c.h.b16 %v892
    %v1040 = vunpack.c.l.b16 %v893
    %v1041 = vunpack.c.h.b16 %v893
    %v1042 = vunpack.c.l.b16 %v894
    %v1043 = vunpack.c.h.b16 %v894
    %v1044 = vunpack.c.l.b16 %v895
    %v1045 = vunpack.c.h.b16 %v895
    %v1046 = vunpack.c.l.b16 %v896
    %v1047 = vunpack.c.h.b16 %v896
    %v1048 = vunpack.c.l.b16 %v897
    %v1049 = vunpack.c.h.b16 %v897
    %v1050 = vunpack.c.l.b16 %v898
    %v1051 = vunpack.c.h.b16 %v898
    %v1052 = vunpack.c.l.b16 %v899
    %v1053 = vunpack.c.h.b16 %v899
    %v1054 = vunpack.c.l.b16 %v900
    %v1055 = vunpack.c.h.b16 %v900
    %v1056 = vunpack.c.l.b16 %v901
    %v1057 = vunpack.c.h.b16 %v901
    %v1058 = vunpack.c.l.b16 %v902
    %v1059 = vunpack.c.h.b16 %v902
    %v1060 = vunpack.c.l.b16 %v903
    %v1061 = vunpack.c.h.b16 %v903
    %v1062 = vunpack.c.l.b16 %v904
    %v1063 = vunpack.c.h.b16 %v904
    %v1064 = vunpack.c.l.b16 %v905
    %v1065 = vunpack.c.h.b16 %v905
    %v1066 = vunpack.c.l.b16 %v906
    %v1067 = vunpack.c.h.b16 %v906
    %v1068 = vunpack.c.l.b16 %v907
    %v1069 = vunpack.c.h.b16 %v907
    %v1070 = vunpack.c.l.b16 %v908
    %v1071 = vunpack.c.h.b16 %v908
    %v1072 = vunpack.c.l.b16 %v909
    %v1073 = vunpack.c.h.b16 %v909
    %v1074 = vunpack.c.l.b16 %v910
    %v1075 = vunpack.c.h.b16 %v910
    %v1076 = vunpack.c.l.b16 %v911
    %v1077 = vunpack.c.h.b16 %v911
    %v1078 = vunpack.c.l.b16 %v912
    %v1079 = vunpack.c.h.b16 %v912
    %v1080 = vunpack.c.l.b16 %v913
    %v1081 = vunpack.c.h.b16 %v913
    %v1082 = vunpack.c.l.b16 %v914
    %v1083 = vunpack.c.h.b16 %v914
    %v1084 = vunpack.c.l.b16 %v915
    %v1085 = vunpack.c.h.b16 %v915
    %v1086 = vunpack.c.l.b16 %v916
    %v1087 = vunpack.c.h.b16 %v916
    %v1088 = vunpack.c.l.b16 %v917
    %v1089 = vunpack.c.h.b16 %v917
    %v1090 = vunpack.c.l.b16 %v918
    %v1091 = vunpack.c.h.b16 %v918
    %v1092 = vunpack.c.l.b16 %v919
    %v1093 = vunpack.c.h.b16 %v919
    %v1094 = vunpack.c.l.b16 %v920
    %v1095 = vunpack.c.h.b16 %v920
    %v1096 = vunpack.c.l.b16 %v921
    %v1097 = vunpack.c.h.b16 %v921
    %v1098 = vunpack.c.l.b16 %v922
    %v1099 = vunpack.c.h.b16 %v922
    %v1100 = vunpack.c.l.b16 %v923
    %v1101 = vunpack.c.h.b16 %v923
    %v1102 = vunpack.c.l.b16 %v924
    %v1103 = vunpack.c.h.b16 %v924
    %v1104 = vpack.c.b16 %v1000, %v998
    %v1105 = vpack.c.b16 %v1001, %v999
    %v1106 = vpack.c.b16 %v1004, %v1002
    %v1107 = vpack.c.b16 %v1005, %v1003
    %v1108 = vpack.c.b16 %v1008, %v1006
    %v1109 = vpack.c.b16 %v1009, %v1007
    %v1110 = vpack.c.b16 %v1012, %v1010
    %v1111 = vpack.c.b16 %v1013, %v1011
    %v1112 = vpack.c.b16 %v1016, %v1014
    %v1113 = vpack.c.b16 %v1017, %v1015
    %v1114 = vpack.c.b16 %v1020, %v1018
    %v1115 = vpack.c.b16 %v1021, %v1019
    %v1116 = vpack.c.b16 %v1024, %v1022
    %v1117 = vpack.c.b16 %v1025, %v1023
    %v1118 = vpack.c.b16 %v1028, %v1026
    %v1119 = vpack.c.b16 %v1029, %v1027
    %v1120 = vpack.c.b16 %v1032, %v1030
    %v1121 = vpack.c.b16 %v1033, %v1031
    %v1122 = vpack.c.b16 %v1036, %v1034
    %v1123 = vpack.c.b16 %v1037, %v1035
    %v1124 = vpack.c.b16 %v1040, %v1038
    %v1125 = vpack.c.b16 %v1041, %v1039
    %v1126 = vpack.c.b16 %v1044, %v1042
    %v1127 = vpack.c.b16 %v1045, %v1043
    %v1128 = vpack.c.b16 %v1048, %v1046
    %v1129 = vpack.c.b16 %v1049, %v1047
    %v1130 = vpack.c.b16 %v1052, %v1050
    %v1131 = vpack.c.b16 %v1053, %v1051
    %v1132 = vpack.c.b16 %v1056, %v1054
    %v1133 = vpack.c.b16 %v1057, %v1055
    %v1134 = vpack.c.b16 %v1060, %v1058
    %v1135 = vpack.c.b16 %v1061, %v1059
    %v1136 = vpack.c.b16 %v1064, %v1062
    %v1137 = vpack.c.b16 %v1065, %v1063
    %v1138 = vpack.c.b16 %v1068, %v1066
    %v1139 = vpack.c.b16 %v1069, %v1067
    %v1140 = vpack.c.b16 %v1072, %v1070
    %v1141 = vpack.c.b16 %v1073, %v1071
    %v1142 = vpack.c.b16 %v1076, %v1074
    %v1143 = vpack.c.b16 %v1077, %v1075
    %v1144 = vpack.c.b16 %v1080, %v1078
    %v1145 = vpack.c.b16 %v1081, %v1079
    %v1146 = vpack.c.b16 %v1084, %v1082
    %v1147 = vpack.c.b16 %v1085, %v1083
    %v1148 = vpack.c.b16 %v1088, %v1086
    %v1149 = vpack.c.b16 %v1089, %v1087
    %v1150 = vpack.c.b16 %v1092, %v1090
    %v1151 = vpack.c.b16 %v1093, %v1091
    %v1152 = vpack.c.b16 %v1096, %v1094
    %v1153 = vpack.c.b16 %v1097, %v1095
    %v1154 = vpack.c.b16 %v1100, %v1098
    %v1155 = vpack.c.b16 %v1101, %v1099
    %v1156 = vpack.c.b16 %v1102, %v1102
    %v1157 = vpack.c.b16 %v1103, %v1103
    %vm1210 = vcmask 293888
    %v1212 = vsel %vm1210, %v928, 0
    %v1215 = vsel %vm1210, %v932, 0
    %v1218 = vsel %vm867, %v1156, 0
    %v1221 = vsel %vm867, %v1157, 0
    %1223 = vmatprep.subr.bf16.mxu0 %v1105
    %1224 = vmatpush1.bf16.msra.mxu0 %v1104
    %1225 = vmatprep.subr.bf16.mxu0 %v1107
    %1226 = vmatpush1.bf16.msra.mxu0 %v1106
    %1227 = vmatprep.subr.bf16.mxu0 %v1109
    %1228 = vmatpush1.bf16.msra.mxu0 %v1108
    %1229 = vmatprep.subr.bf16.mxu0 %v1111
    %1230 = vmatpush1.bf16.msra.mxu0 %v1110
    %1231 = vmatprep.subr.bf16.mxu0 %v1113
    %1232 = vmatpush1.bf16.msra.mxu0 %v1112
    %1233 = vmatprep.subr.bf16.mxu0 %v1115
    %1234 = vmatpush1.bf16.msra.mxu0 %v1114
    %1235 = vmatprep.subr.bf16.mxu0 %v1117
    %1236 = vmatpush1.bf16.msra.mxu0 %v1116
    %1237 = vmatprep.subr.bf16.mxu0 %v1119
    %1238 = vmatpush1.bf16.msra.mxu0 %v1118
    %1239 = vmatprep.subr.bf16.mxu0 %v1121
    %1240 = vmatpush1.bf16.msra.mxu0 %v1120
    %1241 = vmatprep.subr.bf16.mxu0 %v1123
    %1242 = vmatpush1.bf16.msra.mxu0 %v1122
    %1243 = vmatprep.subr.bf16.mxu0 %v1125
    %1244 = vmatpush1.bf16.msra.mxu0 %v1124
    %1245 = vmatprep.subr.bf16.mxu0 %v1127
    %1246 = vmatpush1.bf16.msra.mxu0 %v1126
    %1247 = vmatprep.subr.bf16.mxu0 %v1129
    %1248 = vmatpush1.bf16.msra.mxu0 %v1128
    %1249 = vmatprep.subr.bf16.mxu0 %v1131
    %1250 = vmatpush1.bf16.msra.mxu0 %v1130
    %1251 = vmatprep.subr.bf16.mxu0 %v1133
    %1252 = vmatpush1.bf16.msra.mxu0 %v1132
    %1253 = vmatprep.subr.bf16.mxu0 %v1135
    %1254 = vmatpush1.bf16.msra.mxu0 %v1134
    %1255 = vmatprep.mubr.bf16.mxu0 %v926
    %1256 = vmatmul.mubr.bf16.gmra.mrb[0].mxu0 %v925
    %v1257 = vpop.f32.mrb[0].mxu0
    %v1258 = vadd.f32 %v938, %v1257
    %v1259 = vpop.f32.mrb[0].mxu0
    %v1260 = vadd.f32 %v942, %v1259
    %v1261 = vpop.f32.mrb[0].mxu0
    %v1262 = vadd.f32 %v938, %v1261
    %v1263 = vpop.f32.mrb[0].mxu0
    %v1264 = vadd.f32 %v942, %v1263
    %1265 = vmatprep.mubr.bf16.mxu0 %v930
    %1266 = vmatmul.mubr.bf16.gmra.mrb[0].mxu0 %v929
    %v1267 = vpop.f32.mrb[0].mxu0
    %v1268 = vadd.f32 %v938, %v1267
    %v1269 = vpop.f32.mrb[0].mxu0
    %v1270 = vadd.f32 %v942, %v1269
    %v1271 = vpop.f32.mrb[0].mxu0
    %v1272 = vpop.f32.mrb[0].mxu0
    %1273 = vdwg.mxu0
    %1274 = vmatprep.subr.bf16.mxu0 %v1137
    %1275 = vmatpush1.bf16.msra.mxu0 %v1136
    %1276 = vmatprep.subr.bf16.mxu0 %v1139
    %1277 = vmatpush1.bf16.msra.mxu0 %v1138
    %1278 = vmatprep.subr.bf16.mxu0 %v1141
    %1279 = vmatpush1.bf16.msra.mxu0 %v1140
    %1280 = vmatprep.subr.bf16.mxu0 %v1143
    %1281 = vmatpush1.bf16.msra.mxu0 %v1142
    %1282 = vmatprep.subr.bf16.mxu0 %v1145
    %1283 = vmatpush1.bf16.msra.mxu0 %v1144
    %1284 = vmatprep.subr.bf16.mxu0 %v1147
    %1285 = vmatpush1.bf16.msra.mxu0 %v1146
    %1286 = vmatprep.subr.bf16.mxu0 %v1149
    %1287 = vmatpush1.bf16.msra.mxu0 %v1148
    %1288 = vmatprep.subr.bf16.mxu0 %v1151
    %1289 = vmatpush1.bf16.msra.mxu0 %v1150
    %1290 = vmatprep.subr.bf16.mxu0 %v1153
    %1291 = vmatpush1.bf16.msra.mxu0 %v1152
    %1292 = vmatprep.subr.bf16.mxu0 %v1155
    %1293 = vmatpush1.bf16.msra.mxu0 %v1154
    %1294 = vmatprep.subr.bf16.mxu0 %v1221
    %1295 = vmatpush1.bf16.msra.mxu0 %v1218
    %1296 = vmatprep.subr.bf16.mxu0 0
    %1297 = vmatpush1.bf16.msra.mxu0 0
    %1298 = vmatprep.subr.bf16.mxu0 0
    %1299 = vmatpush1.bf16.msra.mxu0 0
    %1300 = vmatprep.subr.bf16.mxu0 0
    %1301 = vmatpush1.bf16.msra.mxu0 0
    %1302 = vmatprep.subr.bf16.mxu0 0
    %1303 = vmatpush1.bf16.msra.mxu0 0
    %1304 = vmatprep.subr.bf16.mxu0 0
    %1305 = vmatpush1.bf16.msra.mxu0 0
    %1306 = vmatprep.mubr.bf16.mxu0 %v1212
    %1307 = vmatmul.mubr.bf16.gmra.mrb[0].mxu0 %v927
    %v1308 = vpop.f32.mrb[0].mxu0
    %v1309 = vadd.f32 %v1258, %v1308
    %v1310 = vpop.f32.mrb[0].mxu0
    %v1311 = vadd.f32 %v1260, %v1310
    %v1312 = vpop.f32.mrb[0].mxu0
    %v1313 = vadd.f32 %v1262, %v1312
    %v1314 = vpop.f32.mrb[0].mxu0
    %v1315 = vadd.f32 %v1264, %v1314
    %1316 = vmatprep.mubr.bf16.mxu0 %v1215
    %1317 = vmatmul.mubr.bf16.gmra.mrb[0].mxu0 %v931
    %v1318 = vpop.f32.mrb[0].mxu0
    %v1319 = vadd.f32 %v1268, %v1318
    %v1320 = vpop.f32.mrb[0].mxu0
    %v1321 = vadd.f32 %v1270, %v1320
    %v1322 = vpop.f32.mrb[0].mxu0
    %v1323 = vpop.f32.mrb[0].mxu0
    %1324 = vdwg.mxu0
    %v1325 = vmax.f32 %v1309, 0.0
    %v1326 = vmax.f32 %v1311, 0.0
    %v1327 = vmax.f32 %v1313, 0.0
    %v1328 = vmax.f32 %v1315, 0.0
    %v1329 = vmax.f32 %v1319, 0.0
    %v1330 = vmax.f32 %v1321, 0.0
    %v1331 = vld [vmem:[%s8] sm:$0xf]
    %v1332 = vld [vmem:[%s8 + $0x4] sm:$0x1]
    %v1333 = vld [vmem:[%s7] sm:$0xf]
    %v1334 = vld [vmem:[%s7 + $0x4] sm:$0xf]
    %v1335 = vld [vmem:[%s7 + $0x8] sm:$0xf]
    %v1336 = vld [vmem:[%s7 + $0xc] sm:$0xf]
    %v1337 = vld [vmem:[%s7 + $0x10] sm:$0xf]
    %v1338 = vld [vmem:[%s7 + $0x14] sm:$0xf]
    %v1339 = vld [vmem:[%s7 + $0x18] sm:$0xf]
    %v1340 = vld [vmem:[%s7 + $0x1c] sm:$0xf]
    %v1341 = vld [vmem:[%s7 + $0x20] sm:$0xf]
    %v1342 = vld [vmem:[%s7 + $0x24] sm:$0xf]
    %v1343 = vld [vmem:[%s7 + $0x28] sm:$0xf]
    %v1344 = vld [vmem:[%s7 + $0x2c] sm:$0xf]
    %v1345 = vld [vmem:[%s7 + $0x30] sm:$0xf]
    %v1346 = vld [vmem:[%s7 + $0x34] sm:$0xf]
    %v1347 = vld [vmem:[%s7 + $0x38] sm:$0xf]
    %v1348 = vld [vmem:[%s7 + $0x3c] sm:$0xf]
    %v1349 = vld [vmem:[%s7 + $0x40] sm:$0xf]
    %v1350 = vld [vmem:[%s7 + $0x44] sm:$0xf]
    %v1351 = vld [vmem:[%s7 + $0x48] sm:$0xf]
    %v1352 = vld [vmem:[%s7 + $0x4c] sm:$0xf]
    %v1353 = vpack.c.bf16 %v1327, %v1325
    %v1354 = vpack.c.bf16 %v1328, %v1326
    %v1355 = vpack.c.bf16 %v1329, %v1329
    %v1356 = vpack.c.bf16 %v1330, %v1330
    %v1377 = vunpack.c.l.b16 %v1333
    %v1378 = vunpack.c.l.b16 %v1334
    %v1379 = vunpack.c.l.b16 %v1335
    %v1380 = vunpack.c.l.b16 %v1336
    %v1381 = vunpack.c.l.b16 %v1337
    %v1382 = vunpack.c.l.b16 %v1338
    %v1383 = vunpack.c.l.b16 %v1339
    %v1384 = vunpack.c.l.b16 %v1340
    %v1385 = vunpack.c.l.b16 %v1341
    %v1386 = vunpack.c.l.b16 %v1342
    %v1387 = vunpack.c.l.b16 %v1343
    %v1388 = vunpack.c.l.b16 %v1344
    %v1389 = vunpack.c.l.b16 %v1345
    %v1390 = vunpack.c.l.b16 %v1346
    %v1391 = vunpack.c.l.b16 %v1347
    %v1392 = vunpack.c.l.b16 %v1348
    %v1393 = vunpack.c.l.b16 %v1349
    %v1394 = vunpack.c.l.b16 %v1350
    %v1395 = vunpack.c.l.b16 %v1351
    %v1396 = vunpack.c.l.b16 %v1352
    %v1397 = vpack.c.b16 %v1378, %v1377
    %v1398 = vpack.c.b16 %v1380, %v1379
    %v1399 = vpack.c.b16 %v1382, %v1381
    %v1400 = vpack.c.b16 %v1384, %v1383
    %v1401 = vpack.c.b16 %v1386, %v1385
    %v1402 = vpack.c.b16 %v1388, %v1387
    %v1403 = vpack.c.b16 %v1390, %v1389
    %v1404 = vpack.c.b16 %v1392, %v1391
    %v1405 = vpack.c.b16 %v1394, %v1393
    %v1406 = vpack.c.b16 %v1396, %v1395
    %v1418 = vsel %vm136, %v1354, 0
    %v1421 = vsel %vm136, %v1356, 0
    %1423 = vmatprep.subr.bf16.mxu0 0
    %1424 = vmatpush1.bf16.msra.mxu0 %v1397
    %1425 = vmatprep.subr.bf16.mxu0 0
    %1426 = vmatpush1.bf16.msra.mxu0 %v1398
    %1427 = vmatprep.subr.bf16.mxu0 0
    %1428 = vmatpush1.bf16.msra.mxu0 %v1399
    %1429 = vmatprep.subr.bf16.mxu0 0
    %1430 = vmatpush1.bf16.msra.mxu0 %v1400
    %1431 = vmatprep.subr.bf16.mxu0 0
    %1432 = vmatpush1.bf16.msra.mxu0 %v1401
    %1433 = vmatprep.subr.bf16.mxu0 0
    %1434 = vmatpush1.bf16.msra.mxu0 %v1402
    %1435 = vmatprep.subr.bf16.mxu0 0
    %1436 = vmatpush1.bf16.msra.mxu0 %v1403
    %1437 = vmatprep.subr.bf16.mxu0 0
    %1438 = vmatpush1.bf16.msra.mxu0 %v1404
    %1439 = vmatprep.subr.bf16.mxu0 0
    %1440 = vmatpush1.bf16.msra.mxu0 %v1405
    %1441 = vmatprep.subr.bf16.mxu0 0
    %1442 = vmatpush1.bf16.msra.mxu0 %v1406
    %1443 = vmatprep.subr.bf16.mxu0 0
    %1444 = vmatpush1.bf16.msra.mxu0 0
    %1445 = vmatprep.subr.bf16.mxu0 0
    %1446 = vmatpush1.bf16.msra.mxu0 0
    %1447 = vmatprep.subr.bf16.mxu0 0
    %1448 = vmatpush1.bf16.msra.mxu0 0
    %1449 = vmatprep.subr.bf16.mxu0 0
    %1450 = vmatpush1.bf16.msra.mxu0 0
    %1451 = vmatprep.subr.bf16.mxu0 0
    %1452 = vmatpush1.bf16.msra.mxu0 0
    %1453 = vmatprep.subr.bf16.mxu0 0
    %1454 = vmatpush1.bf16.msra.mxu0 0
    %1455 = vmatprep.mubr.bf16.mxu0 %v1418
    %1456 = vmatmul.mubr.bf16.gmra.mrb[0].mxu0 %v1353
    %v1457 = vpop.f32.mrb[0].mxu0
    %v1458 = vadd.f32 0.0, %v1457
    %v1459 = vpop.f32.mrb[0].mxu0
    %v1460 = vpop.f32.mrb[0].mxu0
    %v1461 = vadd.f32 0.0, %v1460
    %v1462 = vpop.f32.mrb[0].mxu0
    %1463 = vmatprep.mubr.bf16.mxu0 %v1421
    %1464 = vmatmul.mubr.bf16.gmra.mrb[0].mxu0 %v1355
    %v1465 = vpop.f32.mrb[0].mxu0
    %v1466 = vadd.f32 0.0, %v1465
    %v1467 = vpop.f32.mrb[0].mxu0
    %v1468 = vpop.f32.mrb[0].mxu0
    %v1469 = vpop.f32.mrb[0].mxu0
    %1470 = vdwg.mxu0
    %v1471 = vpack.c.bf16 %v1461, %v1458
    %v1472 = vpack.c.bf16 %v1466, %v1466
    %v1475 = vunpack.c.l.b16 %v1331
    %v1476 = vunpack.c.l.b16 %v1332
    %v1477 = vpack.c.b16 %v1476, %v1475
    %vm1478 = vcmask 162816
    %v1480 = vsel %vm1478, %v1477, 0
    %v1483 = vsel %vm867, %v1472, 0
    %1485 = vmatprep.subr.bf16.mxu0 0
    %1486 = vmatpush1.bf16.msra.mxu0 %v1471
    %1487 = vmatprep.subr.bf16.mxu0 0
    %1488 = vmatpush1.bf16.msra.mxu0 %v1483
    %1489 = vmatprep.subr.bf16.mxu0 0
    %1490 = vmatpush1.bf16.msra.mxu0 0
    %1491 = vmatprep.subr.bf16.mxu0 0
    %1492 = vmatpush1.bf16.msra.mxu0 0
    %1493 = vmatprep.subr.bf16.mxu0 0
    %1494 = vmatpush1.bf16.msra.mxu0 0
    %1495 = vmatprep.subr.bf16.mxu0 0
    %1496 = vmatpush1.bf16.msra.mxu0 0
    %1497 = vmatprep.subr.bf16.mxu0 0
    %1498 = vmatpush1.bf16.msra.mxu0 0
    %1499 = vmatprep.subr.bf16.mxu0 0
    %1500 = vmatpush1.bf16.msra.mxu0 0
    %1501 = vmatprep.subr.bf16.mxu0 0
    %1502 = vmatpush1.bf16.msra.mxu0 0
    %1503 = vmatprep.subr.bf16.mxu0 0
    %1504 = vmatpush1.bf16.msra.mxu0 0
    %1505 = vmatprep.subr.bf16.mxu0 0
    %1506 = vmatpush1.bf16.msra.mxu0 0
    %1507 = vmatprep.subr.bf16.mxu0 0
    %1508 = vmatpush1.bf16.msra.mxu0 0
    %1509 = vmatprep.subr.bf16.mxu0 0
    %1510 = vmatpush1.bf16.msra.mxu0 0
    %1511 = vmatprep.subr.bf16.mxu0 0
    %1512 = vmatpush1.bf16.msra.mxu0 0
    %1513 = vmatprep.subr.bf16.mxu0 0
    %1514 = vmatpush1.bf16.msra.mxu0 0
    %1515 = vmatprep.subr.bf16.mxu0 0
    %1516 = vmatpush1.bf16.msra.mxu0 0
    %1517 = vmatprep.mubr.bf16.mxu0 0
    %1518 = vmatmul.mubr.bf16.gmra.mrb[0].mxu0 %v1480
    %v1519 = vpop.f32.mrb[0].mxu0
    %v1520 = vadd.f32 0.0, %v1519
    %v1521 = vpop.f32.mrb[0].mxu0
    %v1522 = vpop.f32.mrb[0].mxu0
    %v1523 = vadd.f32 0.0, %v1522
    %v1524 = vpop.f32.mrb[0].mxu0
    %1525 = vdwg.mxu0
    %v1527 = vrot.slane %v1520, 1
    %1528 = vrot.lane.b32.xlu0 %v1527, 80
    %v1529 = vpop.permute.xlu0 %1528
    %v1531 = vrot.slane %v1520, 2
    %1532 = vrot.lane.b32.xlu0 %v1531, 32
    %v1533 = vpop.permute.xlu0 %1532
    %v1535 = vrot.slane %v1520, 3
    %1536 = vrot.lane.b32.xlu0 %v1535, 112
    %v1537 = vpop.permute.xlu0 %1536
    %v1539 = vrot.slane %v1520, 4
    %1540 = vrot.lane.b32.xlu0 %v1539, 64
    %v1541 = vpop.permute.xlu0 %1540
    %v1543 = vsel %vm791, %v1520, %v1529
    %v1544 = vsel %vm136, %v1529, %v1533
    %vm1545 = vcmask 916480
    %v1546 = vsel %vm1545, %v1544, %v1537
    %v1547 = vsel %vm141, %v1537, %v1541
    %v1549 = vrot.slane %v1523, 3
    %1550 = vrot.lane.b32.xlu0 %v1549, 112
    %v1551 = vpop.permute.xlu0 %1550
    %v1553 = vrot.slane %v1523, 4
    %1554 = vrot.lane.b32.xlu0 %v1553, 64
    %v1555 = vpop.permute.xlu0 %1554
    %v1557 = vsel %vm1545, %v1544, %v1551
    %v1558 = vsel %vm141, %v1551, %v1555
    %v1562 = vrot.slane %v1543, 4
    %v1563 = vrot.slane %v1557, 4
    %v1564 = vrot.slane %v1558, 4
    %v1565 = vrot.slane %v1555, 4
    %vm1570 = vcmask 1040384
    %v1571 = vsel %vm1570, %v1543, %v1562
    %v1572 = vsel %vm1570, %v1546, %v1563
    %v1573 = vsel %vm1570, %v1547, %v1564
    %v1574 = vsel %vm1570, %v1541, %v1565
    %v1575 = vld [vmem:[%s9] sm:$0xf]
    %v1576 = vld [vmem:[%s9 + $0x4] sm:$0xf]
    %v1577 = vld [vmem:[%s9 + $0x8] sm:$0xf]
    %v1578 = vld [vmem:[%s9 + $0xc] sm:$0xf]
    %v1579 = vld [vmem:[%s9 + $0x10] sm:$0xf]
    %v1580 = vld [vmem:[%s9 + $0x14] sm:$0xf]
    %v1581 = vld [vmem:[%s9 + $0x18] sm:$0xf]
    %v1582 = vld [vmem:[%s9 + $0x1c] sm:$0xf]
    %v1583 = vld [vmem:[%s9 + $0x20] sm:$0xf]
    %v1584 = vld [vmem:[%s9 + $0x24] sm:$0xf]
    %v1585 = vld [vmem:[%s9 + $0x28] sm:$0xf]
    %v1586 = vld [vmem:[%s9 + $0x2c] sm:$0xf]
    %v1587 = vld [vmem:[%s9 + $0x30] sm:$0xf]
    %v1588 = vld [vmem:[%s9 + $0x34] sm:$0xf]
    %v1589 = vld [vmem:[%s9 + $0x38] sm:$0xf]
    %v1590 = vld [vmem:[%s9 + $0x3c] sm:$0xf]
    %v1591 = vld [vmem:[%s9 + $0x40] sm:$0xf]
    %v1592 = vld [vmem:[%s9 + $0x44] sm:$0xf]
    %v1593 = vld [vmem:[%s9 + $0x48] sm:$0xf]
    %v1594 = vld [vmem:[%s9 + $0x4c] sm:$0xf]
    %v1595 = vld [vmem:[%s9 + $0x50] sm:$0xf]
    %v1596 = vld [vmem:[%s9 + $0x54] sm:$0xf]
    %v1597 = vld [vmem:[%s9 + $0x58] sm:$0xf]
    %v1598 = vld [vmem:[%s9 + $0x5c] sm:$0xf]
    %v1599 = vld [vmem:[%s9 + $0x60] sm:$0xf]
    %v1600 = vld [vmem:[%s9 + $0x64] sm:$0xf]
    %v1601 = vld [vmem:[%s9 + $0x68] sm:$0xf]
    %v1602 = vld [vmem:[%s9 + $0x6c] sm:$0xf]
    %v1603 = vld [vmem:[%s9 + $0x70] sm:$0xf]
    %v1604 = vld [vmem:[%s9 + $0x74] sm:$0xf]
    %v1605 = vld [vmem:[%s9 + $0x78] sm:$0xf]
    %v1606 = vld [vmem:[%s9 + $0x7c] sm:$0xf]
    %v1607 = vld [vmem:[%s9 + $0x80] sm:$0xf]
    %v1608 = vld [vmem:[%s9 + $0x84] sm:$0xf]
    %v1609 = vld [vmem:[%s9 + $0x88] sm:$0xf]
    %v1610 = vld [vmem:[%s9 + $0x8c] sm:$0xf]
    %v1611 = vld [vmem:[%s9 + $0x90] sm:$0xf]
    %v1612 = vld [vmem:[%s9 + $0x94] sm:$0xf]
    %v1613 = vld [vmem:[%s9 + $0x98] sm:$0xf]
    %v1614 = vld [vmem:[%s9 + $0x9c] sm:$0xf]
    %v1615 = vld [vmem:[%s9 + $0xa0] sm:$0xf]
    %v1616 = vld [vmem:[%s9 + $0xa4] sm:$0xf]
    %v1617 = vld [vmem:[%s9 + $0xa8] sm:$0xf]
    %v1618 = vld [vmem:[%s9 + $0xac] sm:$0xf]
    %v1619 = vld [vmem:[%s9 + $0xb0] sm:$0xf]
    %v1620 = vld [vmem:[%s9 + $0xb4] sm:$0xf]
    %v1621 = vld [vmem:[%s9 + $0xb8] sm:$0xf]
    %v1622 = vld [vmem:[%s9 + $0xbc] sm:$0xf]
    %v1623 = vld [vmem:[%s9 + $0xc0] sm:$0xf]
    %v1624 = vld [vmem:[%s9 + $0xc4] sm:$0xf]
    %v1625 = vpack.c.bf16 %v1571, %v1571
    %v1626 = vpack.c.bf16 %v1572, %v1572
    %v1627 = vpack.c.bf16 %v1573, %v1573
    %v1628 = vpack.c.bf16 %v1574, %v1574
    %v1629 = vld [vmem:[%s10] sm:$0x1]
    %v1631 = vlaneseq
    %v1632 = vshrl.u32 %v1631, 7
    %v1633 = vsub.s32 0, %v1632
    %v1634 = vrot.slane %v1629, %v1633
    %v1686 = vunpack.c.l.b16 %v1575
    %v1687 = vunpack.c.l.b16 %v1576
    %v1688 = vunpack.c.l.b16 %v1577
    %v1689 = vunpack.c.l.b16 %v1578
    %v1690 = vunpack.c.l.b16 %v1579
    %v1691 = vunpack.c.l.b16 %v1580
    %v1692 = vunpack.c.l.b16 %v1581
    %v1693 = vunpack.c.l.b16 %v1582
    %v1694 = vunpack.c.l.b16 %v1583
    %v1695 = vunpack.c.l.b16 %v1584
    %v1696 = vunpack.c.l.b16 %v1585
    %v1697 = vunpack.c.l.b16 %v1586
    %v1698 = vunpack.c.l.b16 %v1587
    %v1699 = vunpack.c.l.b16 %v1588
    %v1700 = vunpack.c.l.b16 %v1589
    %v1701 = vunpack.c.l.b16 %v1590
    %v1702 = vunpack.c.l.b16 %v1591
    %v1703 = vunpack.c.l.b16 %v1592
    %v1704 = vunpack.c.l.b16 %v1593
    %v1705 = vunpack.c.l.b16 %v1594
    %v1706 = vunpack.c.l.b16 %v1595
    %v1707 = vunpack.c.l.b16 %v1596
    %v1708 = vunpack.c.l.b16 %v1597
    %v1709 = vunpack.c.l.b16 %v1598
    %v1710 = vunpack.c.l.b16 %v1599
    %v1711 = vunpack.c.l.b16 %v1600
    %v1712 = vunpack.c.l.b16 %v1601
    %v1713 = vunpack.c.l.b16 %v1602
    %v1714 = vunpack.c.l.b16 %v1603
    %v1715 = vunpack.c.l.b16 %v1604
    %v1716 = vunpack.c.l.b16 %v1605
    %v1717 = vunpack.c.l.b16 %v1606
    %v1718 = vunpack.c.l.b16 %v1607
    %v1719 = vunpack.c.l.b16 %v1608
    %v1720 = vunpack.c.l.b16 %v1609
    %v1721 = vunpack.c.l.b16 %v1610
    %v1722 = vunpack.c.l.b16 %v1611
    %v1723 = vunpack.c.l.b16 %v1612
    %v1724 = vunpack.c.l.b16 %v1613
    %v1725 = vunpack.c.l.b16 %v1614
    %v1726 = vunpack.c.l.b16 %v1615
    %v1727 = vunpack.c.l.b16 %v1616
    %v1728 = vunpack.c.l.b16 %v1617
    %v1729 = vunpack.c.l.b16 %v1618
    %v1730 = vunpack.c.l.b16 %v1619
    %v1731 = vunpack.c.l.b16 %v1620
    %v1732 = vunpack.c.l.b16 %v1621
    %v1733 = vunpack.c.l.b16 %v1622
    %v1734 = vunpack.c.l.b16 %v1623
    %v1735 = vunpack.c.l.b16 %v1624
    %v1736 = vpack.c.b16 %v1687, %v1686
    %v1737 = vpack.c.b16 %v1689, %v1688
    %v1738 = vpack.c.b16 %v1691, %v1690
    %v1739 = vpack.c.b16 %v1693, %v1692
    %v1740 = vpack.c.b16 %v1695, %v1694
    %v1741 = vpack.c.b16 %v1697, %v1696
    %v1742 = vpack.c.b16 %v1699, %v1698
    %v1743 = vpack.c.b16 %v1701, %v1700
    %v1744 = vpack.c.b16 %v1703, %v1702
    %v1745 = vpack.c.b16 %v1705, %v1704
    %v1746 = vpack.c.b16 %v1707, %v1706
    %v1747 = vpack.c.b16 %v1709, %v1708
    %v1748 = vpack.c.b16 %v1711, %v1710
    %v1749 = vpack.c.b16 %v1713, %v1712
    %v1750 = vpack.c.b16 %v1715, %v1714
    %v1751 = vpack.c.b16 %v1717, %v1716
    %v1752 = vpack.c.b16 %v1719, %v1718
    %v1753 = vpack.c.b16 %v1721, %v1720
    %v1754 = vpack.c.b16 %v1723, %v1722
    %v1755 = vpack.c.b16 %v1725, %v1724
    %v1756 = vpack.c.b16 %v1727, %v1726
    %v1757 = vpack.c.b16 %v1729, %v1728
    %v1758 = vpack.c.b16 %v1731, %v1730
    %v1759 = vpack.c.b16 %v1733, %v1732
    %v1760 = vpack.c.b16 %v1735, %v1734
    %vm1786 = vcmask 130048
    %v1788 = vsel %vm1786, %v1628, 0
    %1790 = vmatprep.subr.bf16.mxu0 0
    %1791 = vmatpush1.bf16.msra.mxu0 %v1736
    %1792 = vmatprep.subr.bf16.mxu0 0
    %1793 = vmatpush1.bf16.msra.mxu0 %v1737
    %1794 = vmatprep.subr.bf16.mxu0 0
    %1795 = vmatpush1.bf16.msra.mxu0 %v1738
    %1796 = vmatprep.subr.bf16.mxu0 0
    %1797 = vmatpush1.bf16.msra.mxu0 %v1739
    %1798 = vmatprep.subr.bf16.mxu0 0
    %1799 = vmatpush1.bf16.msra.mxu0 %v1740
    %1800 = vmatprep.subr.bf16.mxu0 0
    %1801 = vmatpush1.bf16.msra.mxu0 %v1741
    %1802 = vmatprep.subr.bf16.mxu0 0
    %1803 = vmatpush1.bf16.msra.mxu0 %v1742
    %1804 = vmatprep.subr.bf16.mxu0 0
    %1805 = vmatpush1.bf16.msra.mxu0 %v1743
    %1806 = vmatprep.subr.bf16.mxu0 0
    %1807 = vmatpush1.bf16.msra.mxu0 %v1744
    %1808 = vmatprep.subr.bf16.mxu0 0
    %1809 = vmatpush1.bf16.msra.mxu0 %v1745
    %1810 = vmatprep.subr.bf16.mxu0 0
    %1811 = vmatpush1.bf16.msra.mxu0 %v1746
    %1812 = vmatprep.subr.bf16.mxu0 0
    %1813 = vmatpush1.bf16.msra.mxu0 %v1747
    %1814 = vmatprep.subr.bf16.mxu0 0
    %1815 = vmatpush1.bf16.msra.mxu0 %v1748
    %1816 = vmatprep.subr.bf16.mxu0 0
    %1817 = vmatpush1.bf16.msra.mxu0 %v1749
    %1818 = vmatprep.subr.bf16.mxu0 0
    %1819 = vmatpush1.bf16.msra.mxu0 %v1750
    %1820 = vmatprep.subr.bf16.mxu0 0
    %1821 = vmatpush1.bf16.msra.mxu0 %v1751
    %1822 = vmatprep.mubr.bf16.mxu0 %v1626
    %1823 = vmatmul.mubr.bf16.gmra.mrb[0].mxu0 %v1625
    %v1824 = vpop.f32.mrb[0].mxu0
    %v1825 = vadd.f32 %v1634, %v1824
    %v1826 = vpop.f32.mrb[0].mxu0
    %v1827 = vpop.f32.mrb[0].mxu0
    %v1828 = vpop.f32.mrb[0].mxu0
    %1829 = vdwg.mxu0
    %1830 = vmatprep.subr.bf16.mxu0 0
    %1831 = vmatpush1.bf16.msra.mxu0 %v1752
    %1832 = vmatprep.subr.bf16.mxu0 0
    %1833 = vmatpush1.bf16.msra.mxu0 %v1753
    %1834 = vmatprep.subr.bf16.mxu0 0
    %1835 = vmatpush1.bf16.msra.mxu0 %v1754
    %1836 = vmatprep.subr.bf16.mxu0 0
    %1837 = vmatpush1.bf16.msra.mxu0 %v1755
    %1838 = vmatprep.subr.bf16.mxu0 0
    %1839 = vmatpush1.bf16.msra.mxu0 %v1756
    %1840 = vmatprep.subr.bf16.mxu0 0
    %1841 = vmatpush1.bf16.msra.mxu0 %v1757
    %1842 = vmatprep.subr.bf16.mxu0 0
    %1843 = vmatpush1.bf16.msra.mxu0 %v1758
    %1844 = vmatprep.subr.bf16.mxu0 0
    %1845 = vmatpush1.bf16.msra.mxu0 %v1759
    %1846 = vmatprep.subr.bf16.mxu0 0
    %1847 = vmatpush1.bf16.msra.mxu0 %v1760
    %1848 = vmatprep.subr.bf16.mxu0 0
    %1849 = vmatpush1.bf16.msra.mxu0 0
    %1850 = vmatprep.subr.bf16.mxu0 0
    %1851 = vmatpush1.bf16.msra.mxu0 0
    %1852 = vmatprep.subr.bf16.mxu0 0
    %1853 = vmatpush1.bf16.msra.mxu0 0
    %1854 = vmatprep.subr.bf16.mxu0 0
    %1855 = vmatpush1.bf16.msra.mxu0 0
    %1856 = vmatprep.subr.bf16.mxu0 0
    %1857 = vmatpush1.bf16.msra.mxu0 0
    %1858 = vmatprep.subr.bf16.mxu0 0
    %1859 = vmatpush1.bf16.msra.mxu0 0
    %1860 = vmatprep.subr.bf16.mxu0 0
    %1861 = vmatpush1.bf16.msra.mxu0 0
    %1862 = vmatprep.mubr.bf16.mxu0 %v1788
    %1863 = vmatmul.mubr.bf16.gmra.mrb[0].mxu0 %v1627
    %v1864 = vpop.f32.mrb[0].mxu0
    %v1865 = vadd.f32 %v1825, %v1864
    %v1866 = vpop.f32.mrb[0].mxu0
    %v1867 = vpop.f32.mrb[0].mxu0
    %v1868 = vpop.f32.mrb[0].mxu0
    %1869 = vdwg.mxu0
    %v1870 = vmax.f32 %v1865, 0.0
    %v1871 = vld [vmem:[%s11] sm:$0xf]
    %v1872 = vld [vmem:[%s11 + $0x4] sm:$0xf]
    %v1873 = vld [vmem:[%s11 + $0x8] sm:$0xf]
    %v1874 = vld [vmem:[%s11 + $0xc] sm:$0xf]
    %v1875 = vld [vmem:[%s11 + $0x10] sm:$0xf]
    %v1876 = vld [vmem:[%s11 + $0x14] sm:$0xf]
    %v1877 = vld [vmem:[%s11 + $0x18] sm:$0xf]
    %v1878 = vld [vmem:[%s11 + $0x1c] sm:$0xf]
    %v1879 = vld [vmem:[%s11 + $0x20] sm:$0xf]
    %v1880 = vld [vmem:[%s11 + $0x24] sm:$0xf]
    %v1881 = vld [vmem:[%s11 + $0x28] sm:$0xf]
    %v1882 = vld [vmem:[%s11 + $0x2c] sm:$0xf]
    %v1883 = vld [vmem:[%s11 + $0x30] sm:$0xf]
    %v1884 = vld [vmem:[%s11 + $0x34] sm:$0xf]
    %v1885 = vld [vmem:[%s11 + $0x38] sm:$0xf]
    %v1886 = vpack.c.bf16 %v1870, %v1870
    %v1887 = vld [vmem:[%s12] sm:$0x1]
    %v1889 = vlaneseq
    %v1890 = vshrl.u32 %v1889, 7
    %v1891 = vsub.s32 0, %v1890
    %v1892 = vrot.slane %v1887, %v1891
    %v1909 = vunpack.c.l.b16 %v1871
    %v1910 = vunpack.c.l.b16 %v1872
    %v1911 = vunpack.c.l.b16 %v1873
    %v1912 = vunpack.c.l.b16 %v1874
    %v1913 = vunpack.c.l.b16 %v1875
    %v1914 = vunpack.c.l.b16 %v1876
    %v1915 = vunpack.c.l.b16 %v1877
    %v1916 = vunpack.c.l.b16 %v1878
    %v1917 = vunpack.c.l.b16 %v1879
    %v1918 = vunpack.c.l.b16 %v1880
    %v1919 = vunpack.c.l.b16 %v1881
    %v1920 = vunpack.c.l.b16 %v1882
    %v1921 = vunpack.c.l.b16 %v1883
    %v1922 = vunpack.c.l.b16 %v1884
    %v1923 = vunpack.c.l.b16 %v1885
    %v1924 = vpack.c.b16 %v1910, %v1909
    %v1925 = vpack.c.b16 %v1912, %v1911
    %v1926 = vpack.c.b16 %v1914, %v1913
    %v1927 = vpack.c.b16 %v1916, %v1915
    %v1928 = vpack.c.b16 %v1918, %v1917
    %v1929 = vpack.c.b16 %v1920, %v1919
    %v1930 = vpack.c.b16 %v1922, %v1921
    %v1931 = vpack.c.b16 %v1923, %v1923
    %vm1939 = vcmask 982016
    %v1941 = vsel %vm1939, %v1886, 0
    %v1944 = vsel %vm124, %v1931, 0
    %1946 = vmatprep.subr.bf16.mxu0 0
    %1947 = vmatpush1.bf16.msra.mxu0 %v1924
    %1948 = vmatprep.subr.bf16.mxu0 0
    %1949 = vmatpush1.bf16.msra.mxu0 %v1925
    %1950 = vmatprep.subr.bf16.mxu0 0
    %1951 = vmatpush1.bf16.msra.mxu0 %v1926
    %1952 = vmatprep.subr.bf16.mxu0 0
    %1953 = vmatpush1.bf16.msra.mxu0 %v1927
    %1954 = vmatprep.subr.bf16.mxu0 0
    %1955 = vmatpush1.bf16.msra.mxu0 %v1928
    %1956 = vmatprep.subr.bf16.mxu0 0
    %1957 = vmatpush1.bf16.msra.mxu0 %v1929
    %1958 = vmatprep.subr.bf16.mxu0 0
    %1959 = vmatpush1.bf16.msra.mxu0 %v1930
    %1960 = vmatprep.subr.bf16.mxu0 0
    %1961 = vmatpush1.bf16.msra.mxu0 %v1944
    %1962 = vmatprep.subr.bf16.mxu0 0
    %1963 = vmatpush1.bf16.msra.mxu0 0
    %1964 = vmatprep.subr.bf16.mxu0 0
    %1965 = vmatpush1.bf16.msra.mxu0 0
    %1966 = vmatprep.subr.bf16.mxu0 0
    %1967 = vmatpush1.bf16.msra.mxu0 0
    %1968 = vmatprep.subr.bf16.mxu0 0
    %1969 = vmatpush1.bf16.msra.mxu0 0
    %1970 = vmatprep.subr.bf16.mxu0 0
    %1971 = vmatpush1.bf16.msra.mxu0 0
    %1972 = vmatprep.subr.bf16.mxu0 0
    %1973 = vmatpush1.bf16.msra.mxu0 0
    %1974 = vmatprep.subr.bf16.mxu0 0
    %1975 = vmatpush1.bf16.msra.mxu0 0
    %1976 = vmatprep.subr.bf16.mxu0 0
    %1977 = vmatpush1.bf16.msra.mxu0 0
    %1978 = vmatprep.mubr.bf16.mxu0 0
    %1979 = vmatmul.mubr.bf16.gmra.mrb[0].mxu0 %v1941
    %v1980 = vpop.f32.mrb[0].mxu0
    %v1981 = vadd.f32 %v1892, %v1980
    %v1982 = vpop.f32.mrb[0].mxu0
    %v1983 = vpop.f32.mrb[0].mxu0
    %v1984 = vpop.f32.mrb[0].mxu0
    %1985 = vdwg.mxu0
    %v1986 = vmax.f32 %v1981, 0.0
    %v1987 = vld [vmem:[%s13] sm:$0xf]
    %v1988 = vld [vmem:[%s13 + $0x4] sm:$0xf]
    %v1989 = vld [vmem:[%s13 + $0x8] sm:$0xf]
    %v1990 = vld [vmem:[%s13 + $0xc] sm:$0xf]
    %v1991 = vld [vmem:[%s13 + $0x10] sm:$0xf]
    %v1992 = vld [vmem:[%s13 + $0x14] sm:$0xf]
    %v1993 = vld [vmem:[%s13 + $0x18] sm:$0xf]
    %v1994 = vld [vmem:[%s13 + $0x1c] sm:$0xf]
    %v1995 = vld [vmem:[%s13 + $0x20] sm:$0xf]
    %v1996 = vld [vmem:[%s13 + $0x24] sm:$0xf]
    %v1997 = vld [vmem:[%s13 + $0x28] sm:$0x3]
    %v1998 = vpack.c.bf16 %v1986, %v1986
    %v1999 = vld [vmem:[%s14] sm:$0x1]
    %v2001 = vlaneseq
    %v2002 = vshrl.u32 %v2001, 7
    %v2003 = vsub.s32 0, %v2002
    %v2004 = vrot.slane %v1999, %v2003
    %v2017 = vunpack.c.l.b16 %v1987
    %v2018 = vunpack.c.l.b16 %v1988
    %v2019 = vunpack.c.l.b16 %v1989
    %v2020 = vunpack.c.l.b16 %v1990
    %v2021 = vunpack.c.l.b16 %v1991
    %v2022 = vunpack.c.l.b16 %v1992
    %v2023 = vunpack.c.l.b16 %v1993
    %v2024 = vunpack.c.l.b16 %v1994
    %v2025 = vunpack.c.l.b16 %v1995
    %v2026 = vunpack.c.l.b16 %v1996
    %v2027 = vunpack.c.l.b16 %v1997
    %v2028 = vpack.c.b16 %v2018, %v2017
    %v2029 = vpack.c.b16 %v2020, %v2019
    %v2030 = vpack.c.b16 %v2022, %v2021
    %v2031 = vpack.c.b16 %v2024, %v2023
    %v2032 = vpack.c.b16 %v2026, %v2025
    %v2033 = vpack.c.b16 %v2027, %v2027
    %v2040 = vsel %vm783, %v1998, 0
    %v2043 = vsel %vm867, %v2033, 0
    %2045 = vmatprep.subr.bf16.mxu0 0
    %2046 = vmatpush1.bf16.msra.mxu0 %v2028
    %2047 = vmatprep.subr.bf16.mxu0 0
    %2048 = vmatpush1.bf16.msra.mxu0 %v2029
    %2049 = vmatprep.subr.bf16.mxu0 0
    %2050 = vmatpush1.bf16.msra.mxu0 %v2030
    %2051 = vmatprep.subr.bf16.mxu0 0
    %2052 = vmatpush1.bf16.msra.mxu0 %v2031
    %2053 = vmatprep.subr.bf16.mxu0 0
    %2054 = vmatpush1.bf16.msra.mxu0 %v2032
    %2055 = vmatprep.subr.bf16.mxu0 0
    %2056 = vmatpush1.bf16.msra.mxu0 %v2043
    %2057 = vmatprep.subr.bf16.mxu0 0
    %2058 = vmatpush1.bf16.msra.mxu0 0
    %2059 = vmatprep.subr.bf16.mxu0 0
    %2060 = vmatpush1.bf16.msra.mxu0 0
    %2061 = vmatprep.subr.bf16.mxu0 0
    %2062 = vmatpush1.bf16.msra.mxu0 0
    %2063 = vmatprep.subr.bf16.mxu0 0
    %2064 = vmatpush1.bf16.msra.mxu0 0
    %2065 = vmatprep.subr.bf16.mxu0 0
    %2066 = vmatpush1.bf16.msra.mxu0 0
    %2067 = vmatprep.subr.bf16.mxu0 0
    %2068 = vmatpush1.bf16.msra.mxu0 0
    %2069 = vmatprep.subr.bf16.mxu0 0
    %2070 = vmatpush1.bf16.msra.mxu0 0
    %2071 = vmatprep.subr.bf16.mxu0 0
    %2072 = vmatpush1.bf16.msra.mxu0 0
    %2073 = vmatprep.subr.bf16.mxu0 0
    %2074 = vmatpush1.bf16.msra.mxu0 0
    %2075 = vmatprep.subr.bf16.mxu0 0
    %2076 = vmatpush1.bf16.msra.mxu0 0
    %2077 = vmatprep.mubr.bf16.mxu0 0
    %2078 = vmatmul.mubr.bf16.gmra.mrb[0].mxu0 %v2040
    %v2079 = vpop.f32.mrb[0].mxu0
    %v2080 = vadd.f32 %v2004, %v2079
    %v2081 = vpop.f32.mrb[0].mxu0
    %v2082 = vpop.f32.mrb[0].mxu0
    %v2083 = vpop.f32.mrb[0].mxu0
    %2084 = vdwg.mxu0
    %v2085 = vsel %vm867, %v2080, -inf
    %2086 = vmax.xlane.f32.xlu0 %v2085
    %v2087 = vpop.xlane.xlu0 %2086
    %v2088 = vsub.f32 %v2080, %v2087
    %v2089 = vmul.f32 %v2088, 1.442695
    %v2090 = vpow.pop %v2089
    %v2091 = vsel %vm867, %v2090, 0.0
    %2092 = vadd.xlane.f32.xlu0 %v2091
    %v2093 = vpop.xlane.xlu0 %2092
    %v2094 = vrcp.pop %v2093
    %v2095 = vmul.f32 %v2090, %v2094
    %2096 = vst [vmem:[#allocation2] sm:$0x3] %v2095
    // Predicated region
    $region62: #{lenet_forward.1} parent=1 // pred_check
      _
    $region63: #{lenet_forward.1} parent=1 // pred_check_branch
      %2098 = sbr.rel (0) target = $region65
    $region64: #{lenet_forward.1} parent=1 // pred_region
      %s2100 = ssub.s32 32, 32
      %2101 = vsyncadd [#allocation3], %s2100
      %s2103 = sshll.u32 [#allocation2], 4
      %s2104 = int_to_ptr.vmem [resolvable:$true] %s2103
      %2106 = dma.vmem_to_hbm [thread:$0]  %s2104, 32, %s15, [#allocation3]
    $region65: #{lenet_forward.1} parent=1 // pred_fallthru
      _
    // Predicated region
    $region66: #{lenet_forward.1} parent=1 // pred_check
      _
    $region67: #{lenet_forward.1} parent=1 // pred_check_branch
      %2108 = sbr.rel (0) target = $region69
    $region68: #{lenet_forward.1} parent=1 // pred_region
      %2109 = dma.done [#allocation3], 32
    $region69: #{lenet_forward.1} parent=1 // pred_fallthru
      _
    %2110 = vsyncpa [#allocation3], 1

</llo_original>
